<compile_context>
chip_gen: v7x
topology: tpu7x:2x2x1
jax: 0.10.0
libtpu: 0.0.40
codegen_flags: <defaults>
</compile_context>

<pallas_src>
import functools

import jax
import jax.numpy as jnp
from jax.experimental import pallas as pl
from jax.experimental.pallas import tpu as pltpu


# ----------------------------------------------------------------------------
# Kernel body: one grid step == (B_TILE batch elems) x (one len_q tile)
# ----------------------------------------------------------------------------
def _mha_body(x_q, x_k, x_v, wq_ref, wk_ref, wv_ref, wfc_ref, gamma_ref,
              beta_ref, out_ref, attn_ref, *, n_head, d_k, d_v, eps):
    f32, bf16 = jnp.float32, jnp.bfloat16
    b_tile, tq, d_model = x_q.shape          # x_q: f32 (residual + Q proj)
    _, len_k, _ = x_k.shape                  # x_k / x_v: bf16 (possibly aliased)
    _, len_v, _ = x_v.shape

    # --- fused projections: fold batch tile into the MXU M dimension --------
    # (w_qs already contains the 1/temperature scale.)
    qp = jnp.dot(x_q.reshape(b_tile * tq, d_model).astype(bf16), wq_ref[...],
                 preferred_element_type=f32)
    kp = jnp.dot(x_k.reshape(b_tile * len_k, d_model), wk_ref[...],
                 preferred_element_type=f32)
    vp = jnp.dot(x_v.reshape(b_tile * len_v, d_model), wv_ref[...],
                 preferred_element_type=f32)

    wfc = wfc_ref[...]
    gamma = gamma_ref[...]
    beta = beta_ref[...]

    for b in range(b_tile):
        qb = qp[b * tq:(b + 1) * tq]                     # (tq, n_head*d_k)
        kb = kp[b * len_k:(b + 1) * len_k]               # (len_k, n_head*d_k)
        vb = vp[b * len_v:(b + 1) * len_v]               # (len_v, n_head*d_v)

        y = jnp.zeros((tq, d_model), f32)                # fc accumulator
        for h in range(n_head):
            qh = qb[:, h * d_k:(h + 1) * d_k].astype(bf16)
            kh = kb[:, h * d_k:(h + 1) * d_k].astype(bf16)
            vh = vb[:, h * d_v:(h + 1) * d_v].astype(bf16)

            # contract last axes of both operands -> K consumed untransposed
            s = jax.lax.dot_general(qh, kh, (((1,), (1,)), ((), ())),
                                    preferred_element_type=f32)  # (tq, len_k)

            # softmax over keys (reference dim=2), f32 math, EUP reciprocal
            m = jnp.max(s, axis=-1, keepdims=True)
            e = jnp.exp(s - m)
            p = e * pl.reciprocal(jnp.sum(e, axis=-1, keepdims=True),
                                  approx=True)

            # TODO(synk): attn_dropout / fc dropout are identity (eval mode);
            # training dropout would need pltpu.prng_* here.
            attn_ref[h, b] = p.astype(attn_ref.dtype)    # bf16 writeback

            o = jnp.dot(p.astype(bf16), vh, preferred_element_type=f32)
            # per-head fc accumulation: no lane-axis concat of head outputs
            y = y + jnp.dot(o.astype(bf16), wfc[h * d_v:(h + 1) * d_v, :],
                            preferred_element_type=f32)

        # residual + LayerNorm (f32)
        y = y + x_q[b]
        mu = jnp.mean(y, axis=-1, keepdims=True)
        var = jnp.mean((y - mu) * (y - mu), axis=-1, keepdims=True)
        y = (y - mu) * jax.lax.rsqrt(var + eps)
        out_ref[b] = (y * gamma + beta).astype(out_ref.dtype)


def _mha_kernel_self(xq_ref, xkv_ref, wq_ref, wk_ref, wv_ref, wfc_ref,
                     gamma_ref, beta_ref, out_ref, attn_ref, **kw):
    xkv = xkv_ref[...]                       # single bf16 DMA reused for K & V
    _mha_body(xq_ref[...], xkv, xkv, wq_ref, wk_ref, wv_ref, wfc_ref,
              gamma_ref, beta_ref, out_ref, attn_ref, **kw)


def _mha_kernel_cross(xq_ref, xk_ref, xv_ref, wq_ref, wk_ref, wv_ref, wfc_ref,
                      gamma_ref, beta_ref, out_ref, attn_ref, **kw):
    _mha_body(xq_ref[...], xk_ref[...], xv_ref[...], wq_ref, wk_ref, wv_ref,
              wfc_ref, gamma_ref, beta_ref, out_ref, attn_ref, **kw)


def _choose_tiles(sz_b, len_q):
    """Pick (batch_tile, q_tile): fatten MXU M for small S, bound VMEM for big S."""
    tq = len_q
    if len_q > 256:
        for cand in (256, 128, 64, 32, 16, 8):
            if len_q % cand == 0:
                tq = cand
                break
    b_tile = 1
    for cand in range(sz_b, 0, -1):
        if sz_b % cand == 0 and cand * tq <= 512:
            b_tile = cand
            break
    return b_tile, tq


# ----------------------------------------------------------------------------
# Host wrapper
# ----------------------------------------------------------------------------
def _mha_forward(q, k, v, wq, wk, wv, wfc, gamma, beta, *, n_head, d_k, d_v,
                 eps=1e-5, attn_dtype=jnp.bfloat16):
    # identity check BEFORE any cast (casting would break `is`)
    self_attention = (q is k) and (k is v)

    sz_b, len_q, d_model = q.shape
    _, len_k, _ = k.shape
    _, len_v, _ = v.shape

    b_tile, tq = _choose_tiles(sz_b, len_q)
    n_bt, n_qt = sz_b // b_tile, len_q // tq

    qf = q.astype(jnp.float32)

    kern_kw = dict(n_head=n_head, d_k=d_k, d_v=d_v, eps=eps)
    if self_attention:
        kv_bf = qf.astype(jnp.bfloat16)      # host precast; reused for K and V
        inputs = (qf, kv_bf)
        kernel = functools.partial(_mha_kernel_self, **kern_kw)
        x_specs = [
            pl.BlockSpec((b_tile, tq, d_model), lambda bt, qt: (bt, qt, 0)),
            pl.BlockSpec((b_tile, len_k, d_model), lambda bt, qt: (bt, 0, 0)),
        ]
        kv_in_bytes = kv_bf.size * 2 * n_qt
        step_kv_bytes = b_tile * len_k * d_model * 2
    else:
        k_bf = k.astype(jnp.bfloat16)
        v_bf = v.astype(jnp.bfloat16)
        inputs = (qf, k_bf, v_bf)
        kernel = functools.partial(_mha_kernel_cross, **kern_kw)
        x_specs = [
            pl.BlockSpec((b_tile, tq, d_model), lambda bt, qt: (bt, qt, 0)),
            pl.BlockSpec((b_tile, len_k, d_model), lambda bt, qt: (bt, 0, 0)),
            pl.BlockSpec((b_tile, len_v, d_model), lambda bt, qt: (bt, 0, 0)),
        ]
        kv_in_bytes = (k_bf.size + v_bf.size) * 2 * n_qt
        step_kv_bytes = b_tile * (len_k + len_v) * d_model * 2

    # constant-index weight / affine specs (DMA'd once, revisited thereafter)
    w_specs = [
        pl.BlockSpec(wq.shape, lambda bt, qt: (0, 0)),
        pl.BlockSpec(wk.shape, lambda bt, qt: (0, 0)),
        pl.BlockSpec(wv.shape, lambda bt, qt: (0, 0)),
        pl.BlockSpec(wfc.shape, lambda bt, qt: (0, 0)),
        pl.BlockSpec(gamma.shape, lambda bt, qt: (0, 0)),
        pl.BlockSpec(beta.shape, lambda bt, qt: (0, 0)),
    ]

    attn_itemsize = jnp.dtype(attn_dtype).itemsize

    # --- scheduling hints ----------------------------------------------------
    proj_flops = 2 * d_model * n_head * (sz_b * len_q * d_k
                                         + n_qt * sz_b * len_k * d_k
                                         + n_qt * sz_b * len_v * d_v)
    attn_flops = 2 * n_head * sz_b * len_q * (len_k * d_k + len_v * d_v)
    fc_flops = 2 * sz_b * len_q * n_head * d_v * d_model
    w_bytes = sum(int(w.size) * w.dtype.itemsize for w in (wq, wk, wv, wfc))
    bytes_accessed = (qf.size * 4 + kv_in_bytes + w_bytes
                      + gamma.size * 4 + beta.size * 4
                      + sz_b * len_q * d_model * 4
                      + n_head * sz_b * len_q * len_k * attn_itemsize)
    cost = pl.CostEstimate(
        flops=int(proj_flops + attn_flops + fc_flops),
        transcendentals=int(n_head * sz_b * len_q * (len_k + 1) + sz_b * len_q),
        bytes_accessed=int(bytes_accessed))

    # --- explicit scoped-VMEM budget (double-buffered tiles + weights) -------
    step_in = b_tile * tq * d_model * 4 + step_kv_bytes
    step_out = (b_tile * tq * d_model * 4
                + n_head * b_tile * tq * len_k * attn_itemsize)
    vmem_est = 2 * (step_in + step_out) + 2 * w_bytes + (gamma.size + beta.size) * 8
    vmem_limit = int(min(64 * 2 ** 20, max(32 * 2 ** 20, 4 * vmem_est)))

    out, attn4 = pl.pallas_call(
        kernel,
        grid=(n_bt, n_qt),
        out_shape=(
            jax.ShapeDtypeStruct((sz_b, len_q, d_model), jnp.float32),
            # head-major layout -> reference (n_head*sz_b, len_q, len_k) is a
            # free reshape on the host (no transpose of the largest tensor).
            jax.ShapeDtypeStruct((n_head, sz_b, len_q, len_k), attn_dtype),
        ),
        in_specs=x_specs + w_specs,
        out_specs=(
            pl.BlockSpec((b_tile, tq, d_model), lambda bt, qt: (bt, qt, 0)),
            pl.BlockSpec((n_head, b_tile, tq, len_k),
                         lambda bt, qt: (0, bt, qt, 0)),
        ),
        compiler_params=pltpu.CompilerParams(
            dimension_semantics=("parallel", "parallel"),
            vmem_limit_bytes=vmem_limit),
        cost_estimate=cost,
    )(*inputs, wq, wk, wv, wfc, gamma, beta)

    attn = attn4.reshape(n_head * sz_b, len_q, len_k)
    return out, attn


# ----------------------------------------------------------------------------
# MultiHeadAttention (eval-mode forward; dropout layers are identity)
# ----------------------------------------------------------------------------
class MultiHeadAttentionPallas:
    def __init__(self, n_head, d_model, d_k, d_v, key):
        self.n_head, self.d_model, self.d_k, self.d_v = n_head, d_model, d_k, d_v
        self.temperature = float(d_k) ** 0.5
        k1, k2, k3, k4 = jax.random.split(key, 4)
        std_qk = (2.0 / (d_model + d_k)) ** 0.5
        std_v = (2.0 / (d_model + d_v)) ** 0.5
        std_fc = (2.0 / (n_head * d_v + d_model)) ** 0.5  # xavier_normal_

        # stored transposed (x @ W) and in bf16; matmuls accumulate in f32.
        # 1/temperature folded into w_qs (scores scale applied for free).
        self.w_qs = ((std_qk / self.temperature)
                     * jax.random.normal(k1, (d_model, n_head * d_k))
                     ).astype(jnp.bfloat16)
        self.w_ks = (std_qk * jax.random.normal(k2, (d_model, n_head * d_k))
                     ).astype(jnp.bfloat16)
        self.w_vs = (std_v * jax.random.normal(k3, (d_model, n_head * d_v))
                     ).astype(jnp.bfloat16)
        self.w_fc = (std_fc * jax.random.normal(k4, (n_head * d_v, d_model))
                     ).astype(jnp.bfloat16)
        # LayerNorm affine params (default init, matching nn.LayerNorm).
        self.ln_gamma = jnp.ones((1, d_model), jnp.float32)
        self.ln_beta = jnp.zeros((1, d_model), jnp.float32)

    def __call__(self, q, k, v, mask=None):
        if mask is not None:
            # TODO(synk): masked attention (masked_fill with -inf) not implemented;
            # the reference default path uses mask=None.
            raise NotImplementedError("mask is not supported")
        return _mha_forward(
            q, k, v,
            self.w_qs, self.w_ks, self.w_vs, self.w_fc,
            self.ln_gamma, self.ln_beta,
            n_head=self.n_head, d_k=self.d_k, d_v=self.d_v)


# ----------------------------------------------------------------------------
# Pure-JAX reference (same bf16 weights, f32 math) for a tolerance check
# ----------------------------------------------------------------------------
def _reference_forward(mha, q, k, v, eps=1e-5):
    f32 = jnp.float32
    wq, wk, wv = (w.astype(f32) for w in (mha.w_qs, mha.w_ks, mha.w_vs))
    wfc = mha.w_fc.astype(f32)
    n_head, d_k, d_v = mha.n_head, mha.d_k, mha.d_v
    sz_b, len_q, d_model = q.shape
    len_k = k.shape[1]
    qp = (q @ wq).reshape(sz_b, len_q, n_head, d_k).transpose(2, 0, 1, 3)
    kp = (k @ wk).reshape(sz_b, len_k, n_head, d_k).transpose(2, 0, 1, 3)
    vp = (v @ wv).reshape(sz_b, len_k, n_head, d_v).transpose(2, 0, 1, 3)
    qp = qp.reshape(-1, len_q, d_k)
    kp = kp.reshape(-1, len_k, d_k)
    vp = vp.reshape(-1, len_k, d_v)
    attn = jax.nn.softmax(jnp.einsum('bqd,bkd->bqk', qp, kp), axis=-1)
    o = jnp.einsum('bqk,bkd->bqd', attn, vp)
    o = o.reshape(n_head, sz_b, len_q, d_v).transpose(1, 2, 0, 3)
    o = o.reshape(sz_b, len_q, n_head * d_v)
    y = o @ wfc + q
    mu = y.mean(-1, keepdims=True)
    var = ((y - mu) ** 2).mean(-1, keepdims=True)
    y = (y - mu) / jnp.sqrt(var + eps) * mha.ln_gamma + mha.ln_beta
    return y, attn


if __name__ == "__main__":
    key = jax.random.PRNGKey(0)
    k_param, k_x = jax.random.split(key)

    n_head, d_model, d_k, d_v = 4, 32, 8, 8
    batch, seq = 2, 8

    mha = MultiHeadAttentionPallas(n_head, d_model, d_k, d_v, k_param)

    x = jax.random.normal(k_x, (batch, seq, d_model), dtype=jnp.float32)
    out, attn = mha(x, x, x)
    jax.block_until_ready((out, attn))

    assert out.shape == (batch, seq, d_model)
    assert attn.shape == (n_head * batch, seq, seq)
    assert bool(jnp.all(jnp.isfinite(out))) and bool(jnp.all(jnp.isfinite(attn)))

    # loose tolerance: bf16 weights/activations + approx EUP reciprocal
    row_sums = attn.astype(jnp.float32).sum(-1)
    assert bool(jnp.allclose(row_sums, 1.0, atol=0.1))
    out_ref, attn_ref = _reference_forward(mha, x, x, x)
    assert bool(jnp.allclose(out, out_ref, atol=0.1, rtol=0.1))
    assert bool(jnp.allclose(attn.astype(jnp.float32), attn_ref, atol=0.05))

    print("KERNEL_OK")
</pallas_src>

<mosaic_0001>
module attributes {stable_mosaic.version = 11 : i64} {
  func.func @_mha_kernel_self(%arg0: i32, %arg1: i32, %arg2: memref<2x8x32xf32, #tpu.memory_space<vmem>>, %arg3: memref<2x8x32xbf16, #tpu.memory_space<vmem>>, %arg4: memref<32x32xbf16, #tpu.memory_space<vmem>>, %arg5: memref<32x32xbf16, #tpu.memory_space<vmem>>, %arg6: memref<32x32xbf16, #tpu.memory_space<vmem>>, %arg7: memref<32x32xbf16, #tpu.memory_space<vmem>>, %arg8: memref<1x32xf32, #tpu.memory_space<vmem>>, %arg9: memref<1x32xf32, #tpu.memory_space<vmem>>, %arg10: memref<2x8x32xf32, #tpu.memory_space<vmem>>, %arg11: memref<4x2x8x8xbf16, #tpu.memory_space<vmem>>) attributes {dimension_semantics = [#tpu.dimension_semantics<parallel>, #tpu.dimension_semantics<parallel>], iteration_bounds = array<i64: 1, 1>, scalar_prefetch = 0 : i64, scratch_operands = 0 : i64, tpu.core_type = #tpu.core_type<tc>, window_params = [{transform_indices = @transform_0, window_bounds = array<i64: 2, 8, 32>}, {transform_indices = @transform_1, window_bounds = array<i64: 2, 8, 32>}, {pipeline_mode = #tpu.pipeline_mode<synchronous>, transform_indices = @transform_2, window_bounds = array<i64: 32, 32>}, {pipeline_mode = #tpu.pipeline_mode<synchronous>, transform_indices = @transform_3, window_bounds = array<i64: 32, 32>}, {pipeline_mode = #tpu.pipeline_mode<synchronous>, transform_indices = @transform_4, window_bounds = array<i64: 32, 32>}, {pipeline_mode = #tpu.pipeline_mode<synchronous>, transform_indices = @transform_5, window_bounds = array<i64: 32, 32>}, {pipeline_mode = #tpu.pipeline_mode<synchronous>, transform_indices = @transform_6, window_bounds = array<i64: 1, 32>}, {pipeline_mode = #tpu.pipeline_mode<synchronous>, transform_indices = @transform_7, window_bounds = array<i64: 1, 32>}, {transform_indices = @transform_8, window_bounds = array<i64: 2, 8, 32>}, {transform_indices = @transform_9, window_bounds = array<i64: 4, 2, 8, 8>}]} {
    %c0 = arith.constant 0 : index
    %c0_0 = arith.constant 0 : index
    %c0_1 = arith.constant 0 : index
    %0 = vector.load %arg3[%c0, %c0_0, %c0_1] : memref<2x8x32xbf16, #tpu.memory_space<vmem>>, vector<2x8x32xbf16>
    %c0_2 = arith.constant 0 : index
    %c0_3 = arith.constant 0 : index
    %c0_4 = arith.constant 0 : index
    %1 = vector.load %arg2[%c0_2, %c0_3, %c0_4] : memref<2x8x32xf32, #tpu.memory_space<vmem>>, vector<2x8x32xf32>
    %2 = vector.shape_cast %1 : vector<2x8x32xf32> to vector<16x32xf32>
    %3 = arith.truncf %2 : vector<16x32xf32> to vector<16x32xbf16>
    %c0_5 = arith.constant 0 : index
    %c0_6 = arith.constant 0 : index
    %4 = vector.load %arg4[%c0_5, %c0_6] : memref<32x32xbf16, #tpu.memory_space<vmem>>, vector<32x32xbf16>
    %cst = arith.constant dense<0.000000e+00> : vector<16x32xf32>
    %5 = tpu.matmul %3, %4, %cst {dimension_numbers = #tpu.dot_dimension_numbers<[1], [0], [0], [1], [0, 0, 1, 1], [], []>} : vector<16x32xbf16>, vector<32x32xbf16>, vector<16x32xf32> -> vector<16x32xf32>
    %6 = vector.shape_cast %0 : vector<2x8x32xbf16> to vector<16x32xbf16>
    %c0_7 = arith.constant 0 : index
    %c0_8 = arith.constant 0 : index
    %7 = vector.load %arg5[%c0_7, %c0_8] : memref<32x32xbf16, #tpu.memory_space<vmem>>, vector<32x32xbf16>
    %cst_9 = arith.constant dense<0.000000e+00> : vector<16x32xf32>
    %8 = tpu.matmul %6, %7, %cst_9 {dimension_numbers = #tpu.dot_dimension_numbers<[1], [0], [0], [1], [0, 0, 1, 1], [], []>} : vector<16x32xbf16>, vector<32x32xbf16>, vector<16x32xf32> -> vector<16x32xf32>
    %9 = vector.shape_cast %0 : vector<2x8x32xbf16> to vector<16x32xbf16>
    %c0_10 = arith.constant 0 : index
    %c0_11 = arith.constant 0 : index
    %10 = vector.load %arg6[%c0_10, %c0_11] : memref<32x32xbf16, #tpu.memory_space<vmem>>, vector<32x32xbf16>
    %cst_12 = arith.constant dense<0.000000e+00> : vector<16x32xf32>
    %11 = tpu.matmul %9, %10, %cst_12 {dimension_numbers = #tpu.dot_dimension_numbers<[1], [0], [0], [1], [0, 0, 1, 1], [], []>} : vector<16x32xbf16>, vector<32x32xbf16>, vector<16x32xf32> -> vector<16x32xf32>
    %c0_13 = arith.constant 0 : index
    %c0_14 = arith.constant 0 : index
    %12 = vector.load %arg7[%c0_13, %c0_14] : memref<32x32xbf16, #tpu.memory_space<vmem>>, vector<32x32xbf16>
    %c0_15 = arith.constant 0 : index
    %c0_16 = arith.constant 0 : index
    %13 = vector.load %arg8[%c0_15, %c0_16] : memref<1x32xf32, #tpu.memory_space<vmem>>, vector<1x32xf32>
    %c0_17 = arith.constant 0 : index
    %c0_18 = arith.constant 0 : index
    %14 = vector.load %arg9[%c0_17, %c0_18] : memref<1x32xf32, #tpu.memory_space<vmem>>, vector<1x32xf32>
    %15 = vector.extract_strided_slice %5 {offsets = [0, 0], sizes = [8, 32], strides = [1, 1]} : vector<16x32xf32> to vector<8x32xf32>
    %16 = vector.extract_strided_slice %8 {offsets = [0, 0], sizes = [8, 32], strides = [1, 1]} : vector<16x32xf32> to vector<8x32xf32>
    %17 = vector.extract_strided_slice %11 {offsets = [0, 0], sizes = [8, 32], strides = [1, 1]} : vector<16x32xf32> to vector<8x32xf32>
    %cst_19 = arith.constant 0.000000e+00 : f32
    %18 = vector.broadcast %cst_19 : f32 to vector<8x32xf32>
    %19 = vector.extract_strided_slice %15 {offsets = [0, 0], sizes = [8, 8], strides = [1, 1]} : vector<8x32xf32> to vector<8x8xf32>
    %20 = arith.truncf %19 : vector<8x8xf32> to vector<8x8xbf16>
    %21 = vector.extract_strided_slice %16 {offsets = [0, 0], sizes = [8, 8], strides = [1, 1]} : vector<8x32xf32> to vector<8x8xf32>
    %22 = arith.truncf %21 : vector<8x8xf32> to vector<8x8xbf16>
    %23 = vector.extract_strided_slice %17 {offsets = [0, 0], sizes = [8, 8], strides = [1, 1]} : vector<8x32xf32> to vector<8x8xf32>
    %24 = arith.truncf %23 : vector<8x8xf32> to vector<8x8xbf16>
    %cst_20 = arith.constant dense<0.000000e+00> : vector<8x8xf32>
    %25 = tpu.matmul %20, %22, %cst_20 {dimension_numbers = #tpu.dot_dimension_numbers<[1], [1], [0], [0], [0, 0, 1, 0], [], []>} : vector<8x8xbf16>, vector<8x8xbf16>, vector<8x8xf32> -> vector<8x8xf32>
    %cst_21 = arith.constant dense<0xFF800000> : vector<8xf32>
    %26 = vector.multi_reduction <maximumf>, %25, %cst_21 [1] : vector<8x8xf32> to vector<8xf32>
    %27 = vector.shape_cast %26 : vector<8xf32> to vector<8x1xf32>
    %28 = vector.broadcast %27 : vector<8x1xf32> to vector<8x8xf32>
    %29 = arith.subf %25, %28 : vector<8x8xf32>
    %30 = math.exp %29 : vector<8x8xf32>
    %cst_22 = arith.constant dense<0.000000e+00> : vector<8xf32>
    %31 = vector.multi_reduction <add>, %30, %cst_22 [1] : vector<8x8xf32> to vector<8xf32>
    %32 = vector.shape_cast %31 : vector<8xf32> to vector<8x1xf32>
    %33 = tpu.reciprocal %32 {approx = true} : vector<8x1xf32> -> vector<8x1xf32>
    %34 = vector.broadcast %33 : vector<8x1xf32> to vector<8x8xf32>
    %35 = arith.mulf %30, %34 : vector<8x8xf32>
    %36 = arith.truncf %35 : vector<8x8xf32> to vector<8x8xbf16>
    %c0_23 = arith.constant 0 : index
    %c0_24 = arith.constant 0 : index
    %c0_25 = arith.constant 0 : index
    %c0_26 = arith.constant 0 : index
    %37 = vector.load %arg11[%c0_23, %c0_24, %c0_25, %c0_26] : memref<4x2x8x8xbf16, #tpu.memory_space<vmem>>, vector<1x1x8x8xbf16>
    %38 = vector.shape_cast %37 : vector<1x1x8x8xbf16> to vector<8x8xbf16>
    %39 = vector.shape_cast %36 : vector<8x8xbf16> to vector<1x1x8x8xbf16>
    tpu.vector_store %arg11[%c0_23, %c0_24, %c0_25, %c0_26], %39 {strides = array<i32>} : memref<4x2x8x8xbf16, #tpu.memory_space<vmem>>, vector<1x1x8x8xbf16>,
    %40 = arith.truncf %35 : vector<8x8xf32> to vector<8x8xbf16>
    %cst_27 = arith.constant dense<0.000000e+00> : vector<8x8xf32>
    %41 = tpu.matmul %40, %24, %cst_27 {dimension_numbers = #tpu.dot_dimension_numbers<[1], [0], [0], [1], [0, 0, 1, 1], [], []>} : vector<8x8xbf16>, vector<8x8xbf16>, vector<8x8xf32> -> vector<8x8xf32>
    %42 = arith.truncf %41 : vector<8x8xf32> to vector<8x8xbf16>
    %43 = vector.extract_strided_slice %12 {offsets = [0, 0], sizes = [8, 32], strides = [1, 1]} : vector<32x32xbf16> to vector<8x32xbf16>
    %cst_28 = arith.constant dense<0.000000e+00> : vector<8x32xf32>
    %44 = tpu.matmul %42, %43, %cst_28 {dimension_numbers = #tpu.dot_dimension_numbers<[1], [0], [0], [1], [0, 0, 1, 1], [], []>} : vector<8x8xbf16>, vector<8x32xbf16>, vector<8x32xf32> -> vector<8x32xf32>
    %45 = arith.addf %18, %44 : vector<8x32xf32>
    %46 = vector.extract_strided_slice %15 {offsets = [0, 8], sizes = [8, 8], strides = [1, 1]} : vector<8x32xf32> to vector<8x8xf32>
    %47 = arith.truncf %46 : vector<8x8xf32> to vector<8x8xbf16>
    %48 = vector.extract_strided_slice %16 {offsets = [0, 8], sizes = [8, 8], strides = [1, 1]} : vector<8x32xf32> to vector<8x8xf32>
    %49 = arith.truncf %48 : vector<8x8xf32> to vector<8x8xbf16>
    %50 = vector.extract_strided_slice %17 {offsets = [0, 8], sizes = [8, 8], strides = [1, 1]} : vector<8x32xf32> to vector<8x8xf32>
    %51 = arith.truncf %50 : vector<8x8xf32> to vector<8x8xbf16>
    %cst_29 = arith.constant dense<0.000000e+00> : vector<8x8xf32>
    %52 = tpu.matmul %47, %49, %cst_29 {dimension_numbers = #tpu.dot_dimension_numbers<[1], [1], [0], [0], [0, 0, 1, 0], [], []>} : vector<8x8xbf16>, vector<8x8xbf16>, vector<8x8xf32> -> vector<8x8xf32>
    %cst_30 = arith.constant dense<0xFF800000> : vector<8xf32>
    %53 = vector.multi_reduction <maximumf>, %52, %cst_30 [1] : vector<8x8xf32> to vector<8xf32>
    %54 = vector.shape_cast %53 : vector<8xf32> to vector<8x1xf32>
    %55 = vector.broadcast %54 : vector<8x1xf32> to vector<8x8xf32>
    %56 = arith.subf %52, %55 : vector<8x8xf32>
    %57 = math.exp %56 : vector<8x8xf32>
    %cst_31 = arith.constant dense<0.000000e+00> : vector<8xf32>
    %58 = vector.multi_reduction <add>, %57, %cst_31 [1] : vector<8x8xf32> to vector<8xf32>
    %59 = vector.shape_cast %58 : vector<8xf32> to vector<8x1xf32>
    %60 = tpu.reciprocal %59 {approx = true} : vector<8x1xf32> -> vector<8x1xf32>
    %61 = vector.broadcast %60 : vector<8x1xf32> to vector<8x8xf32>
    %62 = arith.mulf %57, %61 : vector<8x8xf32>
    %63 = arith.truncf %62 : vector<8x8xf32> to vector<8x8xbf16>
    %c1 = arith.constant 1 : index
    %c0_32 = arith.constant 0 : index
    %c0_33 = arith.constant 0 : index
    %c0_34 = arith.constant 0 : index
    %64 = vector.load %arg11[%c1, %c0_32, %c0_33, %c0_34] : memref<4x2x8x8xbf16, #tpu.memory_space<vmem>>, vector<1x1x8x8xbf16>
    %65 = vector.shape_cast %64 : vector<1x1x8x8xbf16> to vector<8x8xbf16>
    %66 = vector.shape_cast %63 : vector<8x8xbf16> to vector<1x1x8x8xbf16>
    tpu.vector_store %arg11[%c1, %c0_32, %c0_33, %c0_34], %66 {strides = array<i32>} : memref<4x2x8x8xbf16, #tpu.memory_space<vmem>>, vector<1x1x8x8xbf16>,
    %67 = arith.truncf %62 : vector<8x8xf32> to vector<8x8xbf16>
    %cst_35 = arith.constant dense<0.000000e+00> : vector<8x8xf32>
    %68 = tpu.matmul %67, %51, %cst_35 {dimension_numbers = #tpu.dot_dimension_numbers<[1], [0], [0], [1], [0, 0, 1, 1], [], []>} : vector<8x8xbf16>, vector<8x8xbf16>, vector<8x8xf32> -> vector<8x8xf32>
    %69 = arith.truncf %68 : vector<8x8xf32> to vector<8x8xbf16>
    %70 = vector.extract_strided_slice %12 {offsets = [8, 0], sizes = [8, 32], strides = [1, 1]} : vector<32x32xbf16> to vector<8x32xbf16>
    %cst_36 = arith.constant dense<0.000000e+00> : vector<8x32xf32>
    %71 = tpu.matmul %69, %70, %cst_36 {dimension_numbers = #tpu.dot_dimension_numbers<[1], [0], [0], [1], [0, 0, 1, 1], [], []>} : vector<8x8xbf16>, vector<8x32xbf16>, vector<8x32xf32> -> vector<8x32xf32>
    %72 = arith.addf %45, %71 : vector<8x32xf32>
    %73 = vector.extract_strided_slice %15 {offsets = [0, 16], sizes = [8, 8], strides = [1, 1]} : vector<8x32xf32> to vector<8x8xf32>
    %74 = arith.truncf %73 : vector<8x8xf32> to vector<8x8xbf16>
    %75 = vector.extract_strided_slice %16 {offsets = [0, 16], sizes = [8, 8], strides = [1, 1]} : vector<8x32xf32> to vector<8x8xf32>
    %76 = arith.truncf %75 : vector<8x8xf32> to vector<8x8xbf16>
    %77 = vector.extract_strided_slice %17 {offsets = [0, 16], sizes = [8, 8], strides = [1, 1]} : vector<8x32xf32> to vector<8x8xf32>
    %78 = arith.truncf %77 : vector<8x8xf32> to vector<8x8xbf16>
    %cst_37 = arith.constant dense<0.000000e+00> : vector<8x8xf32>
    %79 = tpu.matmul %74, %76, %cst_37 {dimension_numbers = #tpu.dot_dimension_numbers<[1], [1], [0], [0], [0, 0, 1, 0], [], []>} : vector<8x8xbf16>, vector<8x8xbf16>, vector<8x8xf32> -> vector<8x8xf32>
    %cst_38 = arith.constant dense<0xFF800000> : vector<8xf32>
    %80 = vector.multi_reduction <maximumf>, %79, %cst_38 [1] : vector<8x8xf32> to vector<8xf32>
    %81 = vector.shape_cast %80 : vector<8xf32> to vector<8x1xf32>
    %82 = vector.broadcast %81 : vector<8x1xf32> to vector<8x8xf32>
    %83 = arith.subf %79, %82 : vector<8x8xf32>
    %84 = math.exp %83 : vector<8x8xf32>
    %cst_39 = arith.constant dense<0.000000e+00> : vector<8xf32>
    %85 = vector.multi_reduction <add>, %84, %cst_39 [1] : vector<8x8xf32> to vector<8xf32>
    %86 = vector.shape_cast %85 : vector<8xf32> to vector<8x1xf32>
    %87 = tpu.reciprocal %86 {approx = true} : vector<8x1xf32> -> vector<8x1xf32>
    %88 = vector.broadcast %87 : vector<8x1xf32> to vector<8x8xf32>
    %89 = arith.mulf %84, %88 : vector<8x8xf32>
    %90 = arith.truncf %89 : vector<8x8xf32> to vector<8x8xbf16>
    %c2 = arith.constant 2 : index
    %c0_40 = arith.constant 0 : index
    %c0_41 = arith.constant 0 : index
    %c0_42 = arith.constant 0 : index
    %91 = vector.load %arg11[%c2, %c0_40, %c0_41, %c0_42] : memref<4x2x8x8xbf16, #tpu.memory_space<vmem>>, vector<1x1x8x8xbf16>
    %92 = vector.shape_cast %91 : vector<1x1x8x8xbf16> to vector<8x8xbf16>
    %93 = vector.shape_cast %90 : vector<8x8xbf16> to vector<1x1x8x8xbf16>
    tpu.vector_store %arg11[%c2, %c0_40, %c0_41, %c0_42], %93 {strides = array<i32>} : memref<4x2x8x8xbf16, #tpu.memory_space<vmem>>, vector<1x1x8x8xbf16>,
    %94 = arith.truncf %89 : vector<8x8xf32> to vector<8x8xbf16>
    %cst_43 = arith.constant dense<0.000000e+00> : vector<8x8xf32>
    %95 = tpu.matmul %94, %78, %cst_43 {dimension_numbers = #tpu.dot_dimension_numbers<[1], [0], [0], [1], [0, 0, 1, 1], [], []>} : vector<8x8xbf16>, vector<8x8xbf16>, vector<8x8xf32> -> vector<8x8xf32>
    %96 = arith.truncf %95 : vector<8x8xf32> to vector<8x8xbf16>
    %97 = vector.extract_strided_slice %12 {offsets = [16, 0], sizes = [8, 32], strides = [1, 1]} : vector<32x32xbf16> to vector<8x32xbf16>
    %cst_44 = arith.constant dense<0.000000e+00> : vector<8x32xf32>
    %98 = tpu.matmul %96, %97, %cst_44 {dimension_numbers = #tpu.dot_dimension_numbers<[1], [0], [0], [1], [0, 0, 1, 1], [], []>} : vector<8x8xbf16>, vector<8x32xbf16>, vector<8x32xf32> -> vector<8x32xf32>
    %99 = arith.addf %72, %98 : vector<8x32xf32>
    %100 = vector.extract_strided_slice %15 {offsets = [0, 24], sizes = [8, 8], strides = [1, 1]} : vector<8x32xf32> to vector<8x8xf32>
    %101 = arith.truncf %100 : vector<8x8xf32> to vector<8x8xbf16>
    %102 = vector.extract_strided_slice %16 {offsets = [0, 24], sizes = [8, 8], strides = [1, 1]} : vector<8x32xf32> to vector<8x8xf32>
    %103 = arith.truncf %102 : vector<8x8xf32> to vector<8x8xbf16>
    %104 = vector.extract_strided_slice %17 {offsets = [0, 24], sizes = [8, 8], strides = [1, 1]} : vector<8x32xf32> to vector<8x8xf32>
    %105 = arith.truncf %104 : vector<8x8xf32> to vector<8x8xbf16>
    %cst_45 = arith.constant dense<0.000000e+00> : vector<8x8xf32>
    %106 = tpu.matmul %101, %103, %cst_45 {dimension_numbers = #tpu.dot_dimension_numbers<[1], [1], [0], [0], [0, 0, 1, 0], [], []>} : vector<8x8xbf16>, vector<8x8xbf16>, vector<8x8xf32> -> vector<8x8xf32>
    %cst_46 = arith.constant dense<0xFF800000> : vector<8xf32>
    %107 = vector.multi_reduction <maximumf>, %106, %cst_46 [1] : vector<8x8xf32> to vector<8xf32>
    %108 = vector.shape_cast %107 : vector<8xf32> to vector<8x1xf32>
    %109 = vector.broadcast %108 : vector<8x1xf32> to vector<8x8xf32>
    %110 = arith.subf %106, %109 : vector<8x8xf32>
    %111 = math.exp %110 : vector<8x8xf32>
    %cst_47 = arith.constant dense<0.000000e+00> : vector<8xf32>
    %112 = vector.multi_reduction <add>, %111, %cst_47 [1] : vector<8x8xf32> to vector<8xf32>
    %113 = vector.shape_cast %112 : vector<8xf32> to vector<8x1xf32>
    %114 = tpu.reciprocal %113 {approx = true} : vector<8x1xf32> -> vector<8x1xf32>
    %115 = vector.broadcast %114 : vector<8x1xf32> to vector<8x8xf32>
    %116 = arith.mulf %111, %115 : vector<8x8xf32>
    %117 = arith.truncf %116 : vector<8x8xf32> to vector<8x8xbf16>
    %c3 = arith.constant 3 : index
    %c0_48 = arith.constant 0 : index
    %c0_49 = arith.constant 0 : index
    %c0_50 = arith.constant 0 : index
    %118 = vector.load %arg11[%c3, %c0_48, %c0_49, %c0_50] : memref<4x2x8x8xbf16, #tpu.memory_space<vmem>>, vector<1x1x8x8xbf16>
    %119 = vector.shape_cast %118 : vector<1x1x8x8xbf16> to vector<8x8xbf16>
    %120 = vector.shape_cast %117 : vector<8x8xbf16> to vector<1x1x8x8xbf16>
    tpu.vector_store %arg11[%c3, %c0_48, %c0_49, %c0_50], %120 {strides = array<i32>} : memref<4x2x8x8xbf16, #tpu.memory_space<vmem>>, vector<1x1x8x8xbf16>,
    %121 = arith.truncf %116 : vector<8x8xf32> to vector<8x8xbf16>
    %cst_51 = arith.constant dense<0.000000e+00> : vector<8x8xf32>
    %122 = tpu.matmul %121, %105, %cst_51 {dimension_numbers = #tpu.dot_dimension_numbers<[1], [0], [0], [1], [0, 0, 1, 1], [], []>} : vector<8x8xbf16>, vector<8x8xbf16>, vector<8x8xf32> -> vector<8x8xf32>
    %123 = arith.truncf %122 : vector<8x8xf32> to vector<8x8xbf16>
    %124 = vector.extract_strided_slice %12 {offsets = [24, 0], sizes = [8, 32], strides = [1, 1]} : vector<32x32xbf16> to vector<8x32xbf16>
    %cst_52 = arith.constant dense<0.000000e+00> : vector<8x32xf32>
    %125 = tpu.matmul %123, %124, %cst_52 {dimension_numbers = #tpu.dot_dimension_numbers<[1], [0], [0], [1], [0, 0, 1, 1], [], []>} : vector<8x8xbf16>, vector<8x32xbf16>, vector<8x32xf32> -> vector<8x32xf32>
    %126 = arith.addf %99, %125 : vector<8x32xf32>
    %127 = vector.extract_strided_slice %1 {offsets = [0, 0, 0], sizes = [1, 8, 32], strides = [1, 1, 1]} : vector<2x8x32xf32> to vector<1x8x32xf32>
    %128 = vector.shape_cast %127 : vector<1x8x32xf32> to vector<8x32xf32>
    %129 = arith.addf %126, %128 : vector<8x32xf32>
    %cst_53 = arith.constant dense<0.000000e+00> : vector<8xf32>
    %130 = vector.multi_reduction <add>, %129, %cst_53 [1] : vector<8x32xf32> to vector<8xf32>
    %131 = vector.shape_cast %130 : vector<8xf32> to vector<8x1xf32>
    %cst_54 = arith.constant 3.200000e+01 : f32
    %132 = vector.broadcast %cst_54 : f32 to vector<8x1xf32>
    %133 = arith.divf %131, %132 : vector<8x1xf32>
    %134 = vector.broadcast %133 : vector<8x1xf32> to vector<8x32xf32>
    %135 = arith.subf %129, %134 : vector<8x32xf32>
    %136 = vector.broadcast %133 : vector<8x1xf32> to vector<8x32xf32>
    %137 = arith.subf %129, %136 : vector<8x32xf32>
    %138 = arith.mulf %135, %137 : vector<8x32xf32>
    %cst_55 = arith.constant dense<0.000000e+00> : vector<8xf32>
    %139 = vector.multi_reduction <add>, %138, %cst_55 [1] : vector<8x32xf32> to vector<8xf32>
    %140 = vector.shape_cast %139 : vector<8xf32> to vector<8x1xf32>
    %cst_56 = arith.constant 3.200000e+01 : f32
    %141 = vector.broadcast %cst_56 : f32 to vector<8x1xf32>
    %142 = arith.divf %140, %141 : vector<8x1xf32>
    %143 = vector.broadcast %133 : vector<8x1xf32> to vector<8x32xf32>
    %144 = arith.subf %129, %143 : vector<8x32xf32>
    %cst_57 = arith.constant 9.99999974E-6 : f32
    %145 = vector.broadcast %cst_57 : f32 to vector<8x1xf32>
    %146 = arith.addf %142, %145 : vector<8x1xf32>
    %147 = math.rsqrt %146 : vector<8x1xf32>
    %148 = vector.broadcast %147 : vector<8x1xf32> to vector<8x32xf32>
    %149 = arith.mulf %144, %148 : vector<8x32xf32>
    %150 = vector.broadcast %13 : vector<1x32xf32> to vector<8x32xf32>
    %151 = arith.mulf %149, %150 : vector<8x32xf32>
    %152 = vector.broadcast %14 : vector<1x32xf32> to vector<8x32xf32>
    %153 = arith.addf %151, %152 : vector<8x32xf32>
    %c0_58 = arith.constant 0 : index
    %c0_59 = arith.constant 0 : index
    %c0_60 = arith.constant 0 : index
    %154 = vector.load %arg10[%c0_58, %c0_59, %c0_60] : memref<2x8x32xf32, #tpu.memory_space<vmem>>, vector<1x8x32xf32>
    %155 = vector.shape_cast %154 : vector<1x8x32xf32> to vector<8x32xf32>
    %156 = vector.shape_cast %153 : vector<8x32xf32> to vector<1x8x32xf32>
    tpu.vector_store %arg10[%c0_58, %c0_59, %c0_60], %156 {strides = array<i32>} : memref<2x8x32xf32, #tpu.memory_space<vmem>>, vector<1x8x32xf32>,
    %157 = vector.extract_strided_slice %5 {offsets = [8, 0], sizes = [8, 32], strides = [1, 1]} : vector<16x32xf32> to vector<8x32xf32>
    %158 = vector.extract_strided_slice %8 {offsets = [8, 0], sizes = [8, 32], strides = [1, 1]} : vector<16x32xf32> to vector<8x32xf32>
    %159 = vector.extract_strided_slice %11 {offsets = [8, 0], sizes = [8, 32], strides = [1, 1]} : vector<16x32xf32> to vector<8x32xf32>
    %cst_61 = arith.constant 0.000000e+00 : f32
    %160 = vector.broadcast %cst_61 : f32 to vector<8x32xf32>
    %161 = vector.extract_strided_slice %157 {offsets = [0, 0], sizes = [8, 8], strides = [1, 1]} : vector<8x32xf32> to vector<8x8xf32>
    %162 = arith.truncf %161 : vector<8x8xf32> to vector<8x8xbf16>
    %163 = vector.extract_strided_slice %158 {offsets = [0, 0], sizes = [8, 8], strides = [1, 1]} : vector<8x32xf32> to vector<8x8xf32>
    %164 = arith.truncf %163 : vector<8x8xf32> to vector<8x8xbf16>
    %165 = vector.extract_strided_slice %159 {offsets = [0, 0], sizes = [8, 8], strides = [1, 1]} : vector<8x32xf32> to vector<8x8xf32>
    %166 = arith.truncf %165 : vector<8x8xf32> to vector<8x8xbf16>
    %cst_62 = arith.constant dense<0.000000e+00> : vector<8x8xf32>
    %167 = tpu.matmul %162, %164, %cst_62 {dimension_numbers = #tpu.dot_dimension_numbers<[1], [1], [0], [0], [0, 0, 1, 0], [], []>} : vector<8x8xbf16>, vector<8x8xbf16>, vector<8x8xf32> -> vector<8x8xf32>
    %cst_63 = arith.constant dense<0xFF800000> : vector<8xf32>
    %168 = vector.multi_reduction <maximumf>, %167, %cst_63 [1] : vector<8x8xf32> to vector<8xf32>
    %169 = vector.shape_cast %168 : vector<8xf32> to vector<8x1xf32>
    %170 = vector.broadcast %169 : vector<8x1xf32> to vector<8x8xf32>
    %171 = arith.subf %167, %170 : vector<8x8xf32>
    %172 = math.exp %171 : vector<8x8xf32>
    %cst_64 = arith.constant dense<0.000000e+00> : vector<8xf32>
    %173 = vector.multi_reduction <add>, %172, %cst_64 [1] : vector<8x8xf32> to vector<8xf32>
    %174 = vector.shape_cast %173 : vector<8xf32> to vector<8x1xf32>
    %175 = tpu.reciprocal %174 {approx = true} : vector<8x1xf32> -> vector<8x1xf32>
    %176 = vector.broadcast %175 : vector<8x1xf32> to vector<8x8xf32>
    %177 = arith.mulf %172, %176 : vector<8x8xf32>
    %178 = arith.truncf %177 : vector<8x8xf32> to vector<8x8xbf16>
    %c0_65 = arith.constant 0 : index
    %c1_66 = arith.constant 1 : index
    %c0_67 = arith.constant 0 : index
    %c0_68 = arith.constant 0 : index
    %179 = vector.load %arg11[%c0_65, %c1_66, %c0_67, %c0_68] : memref<4x2x8x8xbf16, #tpu.memory_space<vmem>>, vector<1x1x8x8xbf16>
    %180 = vector.shape_cast %179 : vector<1x1x8x8xbf16> to vector<8x8xbf16>
    %181 = vector.shape_cast %178 : vector<8x8xbf16> to vector<1x1x8x8xbf16>
    tpu.vector_store %arg11[%c0_65, %c1_66, %c0_67, %c0_68], %181 {strides = array<i32>} : memref<4x2x8x8xbf16, #tpu.memory_space<vmem>>, vector<1x1x8x8xbf16>,
    %182 = arith.truncf %177 : vector<8x8xf32> to vector<8x8xbf16>
    %cst_69 = arith.constant dense<0.000000e+00> : vector<8x8xf32>
    %183 = tpu.matmul %182, %166, %cst_69 {dimension_numbers = #tpu.dot_dimension_numbers<[1], [0], [0], [1], [0, 0, 1, 1], [], []>} : vector<8x8xbf16>, vector<8x8xbf16>, vector<8x8xf32> -> vector<8x8xf32>
    %184 = arith.truncf %183 : vector<8x8xf32> to vector<8x8xbf16>
    %185 = vector.extract_strided_slice %12 {offsets = [0, 0], sizes = [8, 32], strides = [1, 1]} : vector<32x32xbf16> to vector<8x32xbf16>
    %cst_70 = arith.constant dense<0.000000e+00> : vector<8x32xf32>
    %186 = tpu.matmul %184, %185, %cst_70 {dimension_numbers = #tpu.dot_dimension_numbers<[1], [0], [0], [1], [0, 0, 1, 1], [], []>} : vector<8x8xbf16>, vector<8x32xbf16>, vector<8x32xf32> -> vector<8x32xf32>
    %187 = arith.addf %160, %186 : vector<8x32xf32>
    %188 = vector.extract_strided_slice %157 {offsets = [0, 8], sizes = [8, 8], strides = [1, 1]} : vector<8x32xf32> to vector<8x8xf32>
    %189 = arith.truncf %188 : vector<8x8xf32> to vector<8x8xbf16>
    %190 = vector.extract_strided_slice %158 {offsets = [0, 8], sizes = [8, 8], strides = [1, 1]} : vector<8x32xf32> to vector<8x8xf32>
    %191 = arith.truncf %190 : vector<8x8xf32> to vector<8x8xbf16>
    %192 = vector.extract_strided_slice %159 {offsets = [0, 8], sizes = [8, 8], strides = [1, 1]} : vector<8x32xf32> to vector<8x8xf32>
    %193 = arith.truncf %192 : vector<8x8xf32> to vector<8x8xbf16>
    %cst_71 = arith.constant dense<0.000000e+00> : vector<8x8xf32>
    %194 = tpu.matmul %189, %191, %cst_71 {dimension_numbers = #tpu.dot_dimension_numbers<[1], [1], [0], [0], [0, 0, 1, 0], [], []>} : vector<8x8xbf16>, vector<8x8xbf16>, vector<8x8xf32> -> vector<8x8xf32>
    %cst_72 = arith.constant dense<0xFF800000> : vector<8xf32>
    %195 = vector.multi_reduction <maximumf>, %194, %cst_72 [1] : vector<8x8xf32> to vector<8xf32>
    %196 = vector.shape_cast %195 : vector<8xf32> to vector<8x1xf32>
    %197 = vector.broadcast %196 : vector<8x1xf32> to vector<8x8xf32>
    %198 = arith.subf %194, %197 : vector<8x8xf32>
    %199 = math.exp %198 : vector<8x8xf32>
    %cst_73 = arith.constant dense<0.000000e+00> : vector<8xf32>
    %200 = vector.multi_reduction <add>, %199, %cst_73 [1] : vector<8x8xf32> to vector<8xf32>
    %201 = vector.shape_cast %200 : vector<8xf32> to vector<8x1xf32>
    %202 = tpu.reciprocal %201 {approx = true} : vector<8x1xf32> -> vector<8x1xf32>
    %203 = vector.broadcast %202 : vector<8x1xf32> to vector<8x8xf32>
    %204 = arith.mulf %199, %203 : vector<8x8xf32>
    %205 = arith.truncf %204 : vector<8x8xf32> to vector<8x8xbf16>
    %c1_74 = arith.constant 1 : index
    %c1_75 = arith.constant 1 : index
    %c0_76 = arith.constant 0 : index
    %c0_77 = arith.constant 0 : index
    %206 = vector.load %arg11[%c1_74, %c1_75, %c0_76, %c0_77] : memref<4x2x8x8xbf16, #tpu.memory_space<vmem>>, vector<1x1x8x8xbf16>
    %207 = vector.shape_cast %206 : vector<1x1x8x8xbf16> to vector<8x8xbf16>
    %208 = vector.shape_cast %205 : vector<8x8xbf16> to vector<1x1x8x8xbf16>
    tpu.vector_store %arg11[%c1_74, %c1_75, %c0_76, %c0_77], %208 {strides = array<i32>} : memref<4x2x8x8xbf16, #tpu.memory_space<vmem>>, vector<1x1x8x8xbf16>,
    %209 = arith.truncf %204 : vector<8x8xf32> to vector<8x8xbf16>
    %cst_78 = arith.constant dense<0.000000e+00> : vector<8x8xf32>
    %210 = tpu.matmul %209, %193, %cst_78 {dimension_numbers = #tpu.dot_dimension_numbers<[1], [0], [0], [1], [0, 0, 1, 1], [], []>} : vector<8x8xbf16>, vector<8x8xbf16>, vector<8x8xf32> -> vector<8x8xf32>
    %211 = arith.truncf %210 : vector<8x8xf32> to vector<8x8xbf16>
    %212 = vector.extract_strided_slice %12 {offsets = [8, 0], sizes = [8, 32], strides = [1, 1]} : vector<32x32xbf16> to vector<8x32xbf16>
    %cst_79 = arith.constant dense<0.000000e+00> : vector<8x32xf32>
    %213 = tpu.matmul %211, %212, %cst_79 {dimension_numbers = #tpu.dot_dimension_numbers<[1], [0], [0], [1], [0, 0, 1, 1], [], []>} : vector<8x8xbf16>, vector<8x32xbf16>, vector<8x32xf32> -> vector<8x32xf32>
    %214 = arith.addf %187, %213 : vector<8x32xf32>
    %215 = vector.extract_strided_slice %157 {offsets = [0, 16], sizes = [8, 8], strides = [1, 1]} : vector<8x32xf32> to vector<8x8xf32>
    %216 = arith.truncf %215 : vector<8x8xf32> to vector<8x8xbf16>
    %217 = vector.extract_strided_slice %158 {offsets = [0, 16], sizes = [8, 8], strides = [1, 1]} : vector<8x32xf32> to vector<8x8xf32>
    %218 = arith.truncf %217 : vector<8x8xf32> to vector<8x8xbf16>
    %219 = vector.extract_strided_slice %159 {offsets = [0, 16], sizes = [8, 8], strides = [1, 1]} : vector<8x32xf32> to vector<8x8xf32>
    %220 = arith.truncf %219 : vector<8x8xf32> to vector<8x8xbf16>
    %cst_80 = arith.constant dense<0.000000e+00> : vector<8x8xf32>
    %221 = tpu.matmul %216, %218, %cst_80 {dimension_numbers = #tpu.dot_dimension_numbers<[1], [1], [0], [0], [0, 0, 1, 0], [], []>} : vector<8x8xbf16>, vector<8x8xbf16>, vector<8x8xf32> -> vector<8x8xf32>
    %cst_81 = arith.constant dense<0xFF800000> : vector<8xf32>
    %222 = vector.multi_reduction <maximumf>, %221, %cst_81 [1] : vector<8x8xf32> to vector<8xf32>
    %223 = vector.shape_cast %222 : vector<8xf32> to vector<8x1xf32>
    %224 = vector.broadcast %223 : vector<8x1xf32> to vector<8x8xf32>
    %225 = arith.subf %221, %224 : vector<8x8xf32>
    %226 = math.exp %225 : vector<8x8xf32>
    %cst_82 = arith.constant dense<0.000000e+00> : vector<8xf32>
    %227 = vector.multi_reduction <add>, %226, %cst_82 [1] : vector<8x8xf32> to vector<8xf32>
    %228 = vector.shape_cast %227 : vector<8xf32> to vector<8x1xf32>
    %229 = tpu.reciprocal %228 {approx = true} : vector<8x1xf32> -> vector<8x1xf32>
    %230 = vector.broadcast %229 : vector<8x1xf32> to vector<8x8xf32>
    %231 = arith.mulf %226, %230 : vector<8x8xf32>
    %232 = arith.truncf %231 : vector<8x8xf32> to vector<8x8xbf16>
    %c2_83 = arith.constant 2 : index
    %c1_84 = arith.constant 1 : index
    %c0_85 = arith.constant 0 : index
    %c0_86 = arith.constant 0 : index
    %233 = vector.load %arg11[%c2_83, %c1_84, %c0_85, %c0_86] : memref<4x2x8x8xbf16, #tpu.memory_space<vmem>>, vector<1x1x8x8xbf16>
    %234 = vector.shape_cast %233 : vector<1x1x8x8xbf16> to vector<8x8xbf16>
    %235 = vector.shape_cast %232 : vector<8x8xbf16> to vector<1x1x8x8xbf16>
    tpu.vector_store %arg11[%c2_83, %c1_84, %c0_85, %c0_86], %235 {strides = array<i32>} : memref<4x2x8x8xbf16, #tpu.memory_space<vmem>>, vector<1x1x8x8xbf16>,
    %236 = arith.truncf %231 : vector<8x8xf32> to vector<8x8xbf16>
    %cst_87 = arith.constant dense<0.000000e+00> : vector<8x8xf32>
    %237 = tpu.matmul %236, %220, %cst_87 {dimension_numbers = #tpu.dot_dimension_numbers<[1], [0], [0], [1], [0, 0, 1, 1], [], []>} : vector<8x8xbf16>, vector<8x8xbf16>, vector<8x8xf32> -> vector<8x8xf32>
    %238 = arith.truncf %237 : vector<8x8xf32> to vector<8x8xbf16>
    %239 = vector.extract_strided_slice %12 {offsets = [16, 0], sizes = [8, 32], strides = [1, 1]} : vector<32x32xbf16> to vector<8x32xbf16>
    %cst_88 = arith.constant dense<0.000000e+00> : vector<8x32xf32>
    %240 = tpu.matmul %238, %239, %cst_88 {dimension_numbers = #tpu.dot_dimension_numbers<[1], [0], [0], [1], [0, 0, 1, 1], [], []>} : vector<8x8xbf16>, vector<8x32xbf16>, vector<8x32xf32> -> vector<8x32xf32>
    %241 = arith.addf %214, %240 : vector<8x32xf32>
    %242 = vector.extract_strided_slice %157 {offsets = [0, 24], sizes = [8, 8], strides = [1, 1]} : vector<8x32xf32> to vector<8x8xf32>
    %243 = arith.truncf %242 : vector<8x8xf32> to vector<8x8xbf16>
    %244 = vector.extract_strided_slice %158 {offsets = [0, 24], sizes = [8, 8], strides = [1, 1]} : vector<8x32xf32> to vector<8x8xf32>
    %245 = arith.truncf %244 : vector<8x8xf32> to vector<8x8xbf16>
    %246 = vector.extract_strided_slice %159 {offsets = [0, 24], sizes = [8, 8], strides = [1, 1]} : vector<8x32xf32> to vector<8x8xf32>
    %247 = arith.truncf %246 : vector<8x8xf32> to vector<8x8xbf16>
    %cst_89 = arith.constant dense<0.000000e+00> : vector<8x8xf32>
    %248 = tpu.matmul %243, %245, %cst_89 {dimension_numbers = #tpu.dot_dimension_numbers<[1], [1], [0], [0], [0, 0, 1, 0], [], []>} : vector<8x8xbf16>, vector<8x8xbf16>, vector<8x8xf32> -> vector<8x8xf32>
    %cst_90 = arith.constant dense<0xFF800000> : vector<8xf32>
    %249 = vector.multi_reduction <maximumf>, %248, %cst_90 [1] : vector<8x8xf32> to vector<8xf32>
    %250 = vector.shape_cast %249 : vector<8xf32> to vector<8x1xf32>
    %251 = vector.broadcast %250 : vector<8x1xf32> to vector<8x8xf32>
    %252 = arith.subf %248, %251 : vector<8x8xf32>
    %253 = math.exp %252 : vector<8x8xf32>
    %cst_91 = arith.constant dense<0.000000e+00> : vector<8xf32>
    %254 = vector.multi_reduction <add>, %253, %cst_91 [1] : vector<8x8xf32> to vector<8xf32>
    %255 = vector.shape_cast %254 : vector<8xf32> to vector<8x1xf32>
    %256 = tpu.reciprocal %255 {approx = true} : vector<8x1xf32> -> vector<8x1xf32>
    %257 = vector.broadcast %256 : vector<8x1xf32> to vector<8x8xf32>
    %258 = arith.mulf %253, %257 : vector<8x8xf32>
    %259 = arith.truncf %258 : vector<8x8xf32> to vector<8x8xbf16>
    %c3_92 = arith.constant 3 : index
    %c1_93 = arith.constant 1 : index
    %c0_94 = arith.constant 0 : index
    %c0_95 = arith.constant 0 : index
    %260 = vector.load %arg11[%c3_92, %c1_93, %c0_94, %c0_95] : memref<4x2x8x8xbf16, #tpu.memory_space<vmem>>, vector<1x1x8x8xbf16>
    %261 = vector.shape_cast %260 : vector<1x1x8x8xbf16> to vector<8x8xbf16>
    %262 = vector.shape_cast %259 : vector<8x8xbf16> to vector<1x1x8x8xbf16>
    tpu.vector_store %arg11[%c3_92, %c1_93, %c0_94, %c0_95], %262 {strides = array<i32>} : memref<4x2x8x8xbf16, #tpu.memory_space<vmem>>, vector<1x1x8x8xbf16>,
    %263 = arith.truncf %258 : vector<8x8xf32> to vector<8x8xbf16>
    %cst_96 = arith.constant dense<0.000000e+00> : vector<8x8xf32>
    %264 = tpu.matmul %263, %247, %cst_96 {dimension_numbers = #tpu.dot_dimension_numbers<[1], [0], [0], [1], [0, 0, 1, 1], [], []>} : vector<8x8xbf16>, vector<8x8xbf16>, vector<8x8xf32> -> vector<8x8xf32>
    %265 = arith.truncf %264 : vector<8x8xf32> to vector<8x8xbf16>
    %266 = vector.extract_strided_slice %12 {offsets = [24, 0], sizes = [8, 32], strides = [1, 1]} : vector<32x32xbf16> to vector<8x32xbf16>
    %cst_97 = arith.constant dense<0.000000e+00> : vector<8x32xf32>
    %267 = tpu.matmul %265, %266, %cst_97 {dimension_numbers = #tpu.dot_dimension_numbers<[1], [0], [0], [1], [0, 0, 1, 1], [], []>} : vector<8x8xbf16>, vector<8x32xbf16>, vector<8x32xf32> -> vector<8x32xf32>
    %268 = arith.addf %241, %267 : vector<8x32xf32>
    %269 = vector.extract_strided_slice %1 {offsets = [1, 0, 0], sizes = [1, 8, 32], strides = [1, 1, 1]} : vector<2x8x32xf32> to vector<1x8x32xf32>
    %270 = vector.shape_cast %269 : vector<1x8x32xf32> to vector<8x32xf32>
    %271 = arith.addf %268, %270 : vector<8x32xf32>
    %cst_98 = arith.constant dense<0.000000e+00> : vector<8xf32>
    %272 = vector.multi_reduction <add>, %271, %cst_98 [1] : vector<8x32xf32> to vector<8xf32>
    %273 = vector.shape_cast %272 : vector<8xf32> to vector<8x1xf32>
    %cst_99 = arith.constant 3.200000e+01 : f32
    %274 = vector.broadcast %cst_99 : f32 to vector<8x1xf32>
    %275 = arith.divf %273, %274 : vector<8x1xf32>
    %276 = vector.broadcast %275 : vector<8x1xf32> to vector<8x32xf32>
    %277 = arith.subf %271, %276 : vector<8x32xf32>
    %278 = vector.broadcast %275 : vector<8x1xf32> to vector<8x32xf32>
    %279 = arith.subf %271, %278 : vector<8x32xf32>
    %280 = arith.mulf %277, %279 : vector<8x32xf32>
    %cst_100 = arith.constant dense<0.000000e+00> : vector<8xf32>
    %281 = vector.multi_reduction <add>, %280, %cst_100 [1] : vector<8x32xf32> to vector<8xf32>
    %282 = vector.shape_cast %281 : vector<8xf32> to vector<8x1xf32>
    %cst_101 = arith.constant 3.200000e+01 : f32
    %283 = vector.broadcast %cst_101 : f32 to vector<8x1xf32>
    %284 = arith.divf %282, %283 : vector<8x1xf32>
    %285 = vector.broadcast %275 : vector<8x1xf32> to vector<8x32xf32>
    %286 = arith.subf %271, %285 : vector<8x32xf32>
    %cst_102 = arith.constant 9.99999974E-6 : f32
    %287 = vector.broadcast %cst_102 : f32 to vector<8x1xf32>
    %288 = arith.addf %284, %287 : vector<8x1xf32>
    %289 = math.rsqrt %288 : vector<8x1xf32>
    %290 = vector.broadcast %289 : vector<8x1xf32> to vector<8x32xf32>
    %291 = arith.mulf %286, %290 : vector<8x32xf32>
    %292 = vector.broadcast %13 : vector<1x32xf32> to vector<8x32xf32>
    %293 = arith.mulf %291, %292 : vector<8x32xf32>
    %294 = vector.broadcast %14 : vector<1x32xf32> to vector<8x32xf32>
    %295 = arith.addf %293, %294 : vector<8x32xf32>
    %c1_103 = arith.constant 1 : index
    %c0_104 = arith.constant 0 : index
    %c0_105 = arith.constant 0 : index
    %296 = vector.load %arg10[%c1_103, %c0_104, %c0_105] : memref<2x8x32xf32, #tpu.memory_space<vmem>>, vector<1x8x32xf32>
    %297 = vector.shape_cast %296 : vector<1x8x32xf32> to vector<8x32xf32>
    %298 = vector.shape_cast %295 : vector<8x32xf32> to vector<1x8x32xf32>
    tpu.vector_store %arg10[%c1_103, %c0_104, %c0_105], %298 {strides = array<i32>} : memref<2x8x32xf32, #tpu.memory_space<vmem>>, vector<1x8x32xf32>,
    return
  }
  func.func @transform_0(%arg0: i32, %arg1: i32) -> (i32, i32, i32) {
    %c0_i32 = arith.constant 0 : i32
    %c0_i32_0 = arith.constant 0 : i32
    return %arg0, %arg1, %c0_i32 : i32, i32, i32
  }
  func.func @transform_1(%arg0: i32, %arg1: i32) -> (i32, i32, i32) {
    %c0_i32 = arith.constant 0 : i32
    %c0_i32_0 = arith.constant 0 : i32
    %c0_i32_1 = arith.constant 0 : i32
    return %arg0, %c0_i32, %c0_i32_0 : i32, i32, i32
  }
  func.func @transform_2(%arg0: i32, %arg1: i32) -> (i32, i32) {
    %c0_i32 = arith.constant 0 : i32
    %c0_i32_0 = arith.constant 0 : i32
    %c0_i32_1 = arith.constant 0 : i32
    return %c0_i32, %c0_i32_0 : i32, i32
  }
  func.func @transform_3(%arg0: i32, %arg1: i32) -> (i32, i32) {
    %c0_i32 = arith.constant 0 : i32
    %c0_i32_0 = arith.constant 0 : i32
    %c0_i32_1 = arith.constant 0 : i32
    return %c0_i32, %c0_i32_0 : i32, i32
  }
  func.func @transform_4(%arg0: i32, %arg1: i32) -> (i32, i32) {
    %c0_i32 = arith.constant 0 : i32
    %c0_i32_0 = arith.constant 0 : i32
    %c0_i32_1 = arith.constant 0 : i32
    return %c0_i32, %c0_i32_0 : i32, i32
  }
  func.func @transform_5(%arg0: i32, %arg1: i32) -> (i32, i32) {
    %c0_i32 = arith.constant 0 : i32
    %c0_i32_0 = arith.constant 0 : i32
    %c0_i32_1 = arith.constant 0 : i32
    return %c0_i32, %c0_i32_0 : i32, i32
  }
  func.func @transform_6(%arg0: i32, %arg1: i32) -> (i32, i32) {
    %c0_i32 = arith.constant 0 : i32
    %c0_i32_0 = arith.constant 0 : i32
    %c0_i32_1 = arith.constant 0 : i32
    return %c0_i32, %c0_i32_0 : i32, i32
  }
  func.func @transform_7(%arg0: i32, %arg1: i32) -> (i32, i32) {
    %c0_i32 = arith.constant 0 : i32
    %c0_i32_0 = arith.constant 0 : i32
    %c0_i32_1 = arith.constant 0 : i32
    return %c0_i32, %c0_i32_0 : i32, i32
  }
  func.func @transform_8(%arg0: i32, %arg1: i32) -> (i32, i32, i32) {
    %c0_i32 = arith.constant 0 : i32
    %c0_i32_0 = arith.constant 0 : i32
    return %arg0, %arg1, %c0_i32 : i32, i32, i32
  }
  func.func @transform_9(%arg0: i32, %arg1: i32) -> (i32, i32, i32, i32) {
    %c0_i32 = arith.constant 0 : i32
    %c0_i32_0 = arith.constant 0 : i32
    %c0_i32_1 = arith.constant 0 : i32
    return %c0_i32, %arg0, %arg1, %c0_i32_0 : i32, i32, i32, i32
  }
}

</mosaic_0001>

<llo_original>
// kernel: tpu_custom_call.1
$region0: #{tpu_custom_call.1}
  #allocation0 [shape = 'u32[]', space=smem, size = 0x4, offset = 0x4, fixed_abs, tag = 'smem constant byte address 0x4 - core index']
  #allocation1 [shape = 'u32[144,128]{1,0:T(1,128)}', space=vmem, size = 0x12000, scoped, tag = 'internal scratch']
  %s0 = inlined_call_operand.hbm [shape: f32[2,8,32], index: 0, kind: input, shape index: {}]
  %s1 = inlined_call_operand.hbm [shape: bf16[2,8,32], index: 1, kind: input, shape index: {}]
  %s2 = inlined_call_operand.hbm [shape: bf16[32,32], index: 2, kind: input, shape index: {}]
  %s3 = inlined_call_operand.hbm [shape: bf16[32,32], index: 3, kind: input, shape index: {}]
  %s4 = inlined_call_operand.hbm [shape: bf16[32,32], index: 4, kind: input, shape index: {}]
  %s5 = inlined_call_operand.vmem [shape: bf16[32,32], index: 5, kind: input, shape index: {}]
  %s6 = inlined_call_operand.vmem [shape: f32[1,32], index: 6, kind: input, shape index: {}]
  %s7 = inlined_call_operand.vmem [shape: f32[1,32], index: 7, kind: input, shape index: {}]
  %s8 = inlined_call_operand.hbm [shape: f32[2,8,32], index: 8, kind: output, shape index: {0}]
  %s9 = inlined_call_operand.hbm [shape: bf16[4,2,8,8], index: 9, kind: output, shape index: {1}]
  %10 = xla_tuple %s8, %s9
  %s11 = sld [smem:[#allocation0]]
  $region70: #{tpu_custom_call.1} parent=0
    _
  %s13 = ssub.s32 1, %s11
  %s14 = scalar_select 0, %s13, %s11
  $region1: #{tpu_custom_call.1} parent=0
    #allocation2 [shape = 'u8[8192]{0}', space=vmem, size = 0x2000, scoped, tag = 'input window, operand 0, single buffered']
    #allocation3 [shape = 's32[1]{0}', space=sflag, size = 0x4, scoped, tag = 'scoped memory for tpu_custom_call.1']
    #allocation4 [shape = 's32[1]{0}', space=sflag, size = 0x4, scoped, tag = 'scoped memory for tpu_custom_call.1']
    #allocation5 [shape = 'u8[4096]{0}', space=vmem, size = 0x1000, scoped, tag = 'input window, operand 1, single buffered']
    #allocation6 [shape = 's32[1]{0}', space=sflag, size = 0x4, scoped, tag = 'scoped memory for tpu_custom_call.1']
    #allocation7 [shape = 'u8[8192]{0}', space=vmem, size = 0x2000, scoped, tag = 'input window, operand 2, single buffered']
    #allocation8 [shape = 'u8[8192]{0}', space=vmem, size = 0x2000, scoped, tag = 'input window, operand 3, single buffered']
    #allocation9 [shape = 's32[1]{0}', space=sflag, size = 0x4, scoped, tag = 'scoped memory for tpu_custom_call.1']
    #allocation10 [shape = 'u8[8192]{0}', space=vmem, size = 0x2000, scoped, tag = 'input window, operand 4, single buffered']
    #allocation11 [shape = 'u8[8192]{0}', space=vmem, size = 0x2000, scoped, tag = 'output window, operand 0, single buffered']
    #allocation12 [shape = 'u8[16384]{0}', space=vmem, size = 0x4000, scoped, tag = 'output window, operand 1, single buffered']
    #allocation13 [shape = 's32[1]{0}', space=sflag, size = 0x4, scoped, tag = 'scoped memory for tpu_custom_call.1']
    %15 = vsyncpa [#allocation3], 0
    %16 = vsyncpa [#allocation6], 0
    %17 = vsyncpa [#allocation9], 0
    %18 = vsyncpa [#allocation4], 0
    %19 = vsyncpa [#allocation13], 0
    // Predicated region
    $region2: #{tpu_custom_call.1} parent=1 // pred_check
      _
    $region3: #{tpu_custom_call.1} parent=1 // pred_check_branch
      %21 = sbr.rel (0) target = $region5
    $region4: #{tpu_custom_call.1} parent=1 // pred_region
      %s23 = ssub.s32 256, 256
      %24 = vsyncadd [#allocation3], %s23
      %s25 = sshll.u32 [#allocation2], 4
      %s26 = int_to_ptr.vmem [resolvable:$true] %s25
      %31 = dma.hbm_to_vmem [thread:$0]  %s0, 256, %s26, [#allocation3], 128, 128, 8
    $region5: #{tpu_custom_call.1} parent=1 // pred_fallthru
      _
    // Predicated region
    $region6: #{tpu_custom_call.1} parent=1 // pred_check
      _
    $region7: #{tpu_custom_call.1} parent=1 // pred_check_branch
      %33 = sbr.rel (0) target = $region9
    $region8: #{tpu_custom_call.1} parent=1 // pred_region
      %s35 = ssub.s32 128, 128
      %36 = vsyncadd [#allocation6], %s35
      %s37 = sshll.u32 [#allocation5], 4
      %s38 = int_to_ptr.vmem [resolvable:$true] %s37
      %43 = dma.hbm_to_vmem [thread:$0]  %s1, 128, %s38, [#allocation6], 64, 64, 4
    $region9: #{tpu_custom_call.1} parent=1 // pred_fallthru
      _
    // Predicated region
    $region10: #{tpu_custom_call.1} parent=1 // pred_check
      _
    $region11: #{tpu_custom_call.1} parent=1 // pred_check_branch
      %45 = sbr.rel (0) target = $region13
    $region12: #{tpu_custom_call.1} parent=1 // pred_region
      %s47 = ssub.s32 256, 256
      %48 = vsyncadd [#allocation6], %s47
      %s49 = sshll.u32 [#allocation7], 4
      %s50 = int_to_ptr.vmem [resolvable:$true] %s49
      %55 = dma.hbm_to_vmem [thread:$0]  %s2, 256, %s50, [#allocation6], 64, 64, 4
    $region13: #{tpu_custom_call.1} parent=1 // pred_fallthru
      _
    // Predicated region
    $region14: #{tpu_custom_call.1} parent=1 // pred_check
      _
    $region15: #{tpu_custom_call.1} parent=1 // pred_check_branch
      %57 = sbr.rel (0) target = $region17
    $region16: #{tpu_custom_call.1} parent=1 // pred_region
      %s59 = ssub.s32 256, 256
      %60 = vsyncadd [#allocation9], %s59
      %s61 = sshll.u32 [#allocation8], 4
      %s62 = int_to_ptr.vmem [resolvable:$true] %s61
      %67 = dma.hbm_to_vmem [thread:$0]  %s3, 256, %s62, [#allocation9], 64, 64, 4
    $region17: #{tpu_custom_call.1} parent=1 // pred_fallthru
      _
    // Predicated region
    $region18: #{tpu_custom_call.1} parent=1 // pred_check
      _
    $region19: #{tpu_custom_call.1} parent=1 // pred_check_branch
      %69 = sbr.rel (0) target = $region21
    $region20: #{tpu_custom_call.1} parent=1 // pred_region
      %s71 = ssub.s32 256, 256
      %72 = vsyncadd [#allocation9], %s71
      %s73 = sshll.u32 [#allocation10], 4
      %s74 = int_to_ptr.vmem [resolvable:$true] %s73
      %79 = dma.hbm_to_vmem [thread:$0]  %s4, 256, %s74, [#allocation9], 64, 64, 4
    $region21: #{tpu_custom_call.1} parent=1 // pred_fallthru
      _
    // Predicated region
    $region22: #{tpu_custom_call.1} parent=1 // pred_check
      _
    $region23: #{tpu_custom_call.1} parent=1 // pred_check_branch
      %81 = sbr.rel (0) target = $region25
    $region24: #{tpu_custom_call.1} parent=1 // pred_region
      _
    $region25: #{tpu_custom_call.1} parent=1 // pred_fallthru
      _
    // Predicated region
    $region26: #{tpu_custom_call.1} parent=1 // pred_check
      _
    $region27: #{tpu_custom_call.1} parent=1 // pred_check_branch
      %83 = sbr.rel (0) target = $region29
    $region28: #{tpu_custom_call.1} parent=1 // pred_region
      _
    $region29: #{tpu_custom_call.1} parent=1 // pred_fallthru
      _
    // Predicated region
    $region30: #{tpu_custom_call.1} parent=1 // pred_check
      _
    $region31: #{tpu_custom_call.1} parent=1 // pred_check_branch
      %85 = sbr.rel (0) target = $region33
    $region32: #{tpu_custom_call.1} parent=1 // pred_region
      _
    $region33: #{tpu_custom_call.1} parent=1 // pred_fallthru
      _
    // Predicated region
    $region34: #{tpu_custom_call.1} parent=1 // pred_check
      _
    $region35: #{tpu_custom_call.1} parent=1 // pred_check_branch
      %87 = sbr.rel (0) target = $region37
    $region36: #{tpu_custom_call.1} parent=1 // pred_region
      %88 = dma.done [#allocation3], 256
    $region37: #{tpu_custom_call.1} parent=1 // pred_fallthru
      _
    // Predicated region
    $region38: #{tpu_custom_call.1} parent=1 // pred_check
      _
    $region39: #{tpu_custom_call.1} parent=1 // pred_check_branch
      %90 = sbr.rel (0) target = $region41
    $region40: #{tpu_custom_call.1} parent=1 // pred_region
      %91 = dma.done [#allocation6], 128
    $region41: #{tpu_custom_call.1} parent=1 // pred_fallthru
      _
    // Predicated region
    $region42: #{tpu_custom_call.1} parent=1 // pred_check
      _
    $region43: #{tpu_custom_call.1} parent=1 // pred_check_branch
      %93 = sbr.rel (0) target = $region45
    $region44: #{tpu_custom_call.1} parent=1 // pred_region
      %94 = dma.done [#allocation6], 256
    $region45: #{tpu_custom_call.1} parent=1 // pred_fallthru
      _
    // Predicated region
    $region46: #{tpu_custom_call.1} parent=1 // pred_check
      _
    $region47: #{tpu_custom_call.1} parent=1 // pred_check_branch
      %96 = sbr.rel (0) target = $region49
    $region48: #{tpu_custom_call.1} parent=1 // pred_region
      %97 = dma.done [#allocation9], 256
    $region49: #{tpu_custom_call.1} parent=1 // pred_fallthru
      _
    // Predicated region
    $region50: #{tpu_custom_call.1} parent=1 // pred_check
      _
    $region51: #{tpu_custom_call.1} parent=1 // pred_check_branch
      %99 = sbr.rel (0) target = $region53
    $region52: #{tpu_custom_call.1} parent=1 // pred_region
      %100 = dma.done [#allocation9], 256
    $region53: #{tpu_custom_call.1} parent=1 // pred_fallthru
      _
    %v102 = vld [vmem:[#allocation5] sm:$0xf]
    %v103 = vld [vmem:[#allocation5 + $0x4] sm:$0xf]
    %v104 = vld [vmem:[#allocation2] sm:$0xff]
    %v105 = vld [vmem:[#allocation2 + $0x8] sm:$0xff]
    %v106 = vpack.c.bf16 %v105, %v104
    %v107 = vld [vmem:[#allocation7] sm:$0xf]
    %v108 = vld [vmem:[#allocation7 + $0x4] sm:$0xf]
    %v109 = vld [vmem:[#allocation7 + $0x8] sm:$0xf]
    %v110 = vld [vmem:[#allocation7 + $0xc] sm:$0xf]
    %v115 = vunpack.c.l.b16 %v107
    %v116 = vunpack.c.l.b16 %v108
    %v117 = vunpack.c.l.b16 %v109
    %v118 = vunpack.c.l.b16 %v110
    %v119 = vpack.c.b16 %v116, %v115
    %v120 = vpack.c.b16 %v118, %v117
    %vm123 = vcmask 261120
    %v125 = vsel %vm123, %v106, 0
    %127 = vmatprep.subr.bf16.mxu0 0
    %128 = vmatpush1.bf16.msra.mxu0 %v119
    %129 = vmatprep.subr.bf16.mxu0 0
    %130 = vmatpush1.bf16.msra.mxu0 %v120
    %131 = vmatprep.subr.bf16.mxu0 0
    %132 = vmatpush1.bf16.msra.mxu0 0
    %133 = vmatprep.subr.bf16.mxu0 0
    %134 = vmatpush1.bf16.msra.mxu0 0
    %135 = vmatprep.subr.bf16.mxu0 0
    %136 = vmatpush1.bf16.msra.mxu0 0
    %137 = vmatprep.subr.bf16.mxu0 0
    %138 = vmatpush1.bf16.msra.mxu0 0
    %139 = vmatprep.subr.bf16.mxu0 0
    %140 = vmatpush1.bf16.msra.mxu0 0
    %141 = vmatprep.subr.bf16.mxu0 0
    %142 = vmatpush1.bf16.msra.mxu0 0
    %143 = vmatprep.subr.bf16.mxu0 0
    %144 = vmatpush1.bf16.msra.mxu0 0
    %145 = vmatprep.subr.bf16.mxu0 0
    %146 = vmatpush1.bf16.msra.mxu0 0
    %147 = vmatprep.subr.bf16.mxu0 0
    %148 = vmatpush1.bf16.msra.mxu0 0
    %149 = vmatprep.subr.bf16.mxu0 0
    %150 = vmatpush1.bf16.msra.mxu0 0
    %151 = vmatprep.subr.bf16.mxu0 0
    %152 = vmatpush1.bf16.msra.mxu0 0
    %153 = vmatprep.subr.bf16.mxu0 0
    %154 = vmatpush1.bf16.msra.mxu0 0
    %155 = vmatprep.subr.bf16.mxu0 0
    %156 = vmatpush1.bf16.msra.mxu0 0
    %157 = vmatprep.subr.bf16.mxu0 0
    %158 = vmatpush1.bf16.msra.mxu0 0
    %159 = vmatprep.mubr.bf16.mxu0 0
    %160 = vmatmul.mubr.bf16.gmra.mrb[0].mxu0 %v125
    %v161 = vpop.f32.mrb[0].mxu0
    %v162 = vadd.f32 0.0, %v161
    %v163 = vpop.f32.mrb[0].mxu0
    %v164 = vpop.f32.mrb[0].mxu0
    %v165 = vadd.f32 0.0, %v164
    %v166 = vpop.f32.mrb[0].mxu0
    %167 = vdwg.mxu0
    %v168 = vld [vmem:[#allocation8] sm:$0xf]
    %v169 = vld [vmem:[#allocation8 + $0x4] sm:$0xf]
    %v170 = vld [vmem:[#allocation8 + $0x8] sm:$0xf]
    %v171 = vld [vmem:[#allocation8 + $0xc] sm:$0xf]
    %v174 = vunpack.c.l.b16 %v102
    %v175 = vunpack.c.l.b16 %v103
    %v176 = vpack.c.b16 %v175, %v174
    %v181 = vunpack.c.l.b16 %v168
    %v182 = vunpack.c.l.b16 %v169
    %v183 = vunpack.c.l.b16 %v170
    %v184 = vunpack.c.l.b16 %v171
    %v185 = vpack.c.b16 %v182, %v181
    %v186 = vpack.c.b16 %v184, %v183
    %v190 = vsel %vm123, %v176, 0
    %192 = vmatprep.subr.bf16.mxu0 0
    %193 = vmatpush1.bf16.msra.mxu0 %v185
    %194 = vmatprep.subr.bf16.mxu0 0
    %195 = vmatpush1.bf16.msra.mxu0 %v186
    %196 = vmatprep.subr.bf16.mxu0 0
    %197 = vmatpush1.bf16.msra.mxu0 0
    %198 = vmatprep.subr.bf16.mxu0 0
    %199 = vmatpush1.bf16.msra.mxu0 0
    %200 = vmatprep.subr.bf16.mxu0 0
    %201 = vmatpush1.bf16.msra.mxu0 0
    %202 = vmatprep.subr.bf16.mxu0 0
    %203 = vmatpush1.bf16.msra.mxu0 0
    %204 = vmatprep.subr.bf16.mxu0 0
    %205 = vmatpush1.bf16.msra.mxu0 0
    %206 = vmatprep.subr.bf16.mxu0 0
    %207 = vmatpush1.bf16.msra.mxu0 0
    %208 = vmatprep.subr.bf16.mxu0 0
    %209 = vmatpush1.bf16.msra.mxu0 0
    %210 = vmatprep.subr.bf16.mxu0 0
    %211 = vmatpush1.bf16.msra.mxu0 0
    %212 = vmatprep.subr.bf16.mxu0 0
    %213 = vmatpush1.bf16.msra.mxu0 0
    %214 = vmatprep.subr.bf16.mxu0 0
    %215 = vmatpush1.bf16.msra.mxu0 0
    %216 = vmatprep.subr.bf16.mxu0 0
    %217 = vmatpush1.bf16.msra.mxu0 0
    %218 = vmatprep.subr.bf16.mxu0 0
    %219 = vmatpush1.bf16.msra.mxu0 0
    %220 = vmatprep.subr.bf16.mxu0 0
    %221 = vmatpush1.bf16.msra.mxu0 0
    %222 = vmatprep.subr.bf16.mxu0 0
    %223 = vmatpush1.bf16.msra.mxu0 0
    %224 = vmatprep.mubr.bf16.mxu0 0
    %225 = vmatmul.mubr.bf16.gmra.mrb[0].mxu0 %v190
    %v226 = vpop.f32.mrb[0].mxu0
    %v227 = vadd.f32 0.0, %v226
    %v228 = vpop.f32.mrb[0].mxu0
    %v229 = vpop.f32.mrb[0].mxu0
    %v230 = vadd.f32 0.0, %v229
    %v231 = vpop.f32.mrb[0].mxu0
    %232 = vdwg.mxu0
    %v233 = vld [vmem:[#allocation10] sm:$0xf]
    %v234 = vld [vmem:[#allocation10 + $0x4] sm:$0xf]
    %v235 = vld [vmem:[#allocation10 + $0x8] sm:$0xf]
    %v236 = vld [vmem:[#allocation10 + $0xc] sm:$0xf]
    %v241 = vunpack.c.l.b16 %v233
    %v242 = vunpack.c.l.b16 %v234
    %v243 = vunpack.c.l.b16 %v235
    %v244 = vunpack.c.l.b16 %v236
    %v245 = vpack.c.b16 %v242, %v241
    %v246 = vpack.c.b16 %v244, %v243
    %249 = vmatprep.subr.bf16.mxu0 0
    %250 = vmatpush1.bf16.msra.mxu0 %v245
    %251 = vmatprep.subr.bf16.mxu0 0
    %252 = vmatpush1.bf16.msra.mxu0 %v246
    %253 = vmatprep.subr.bf16.mxu0 0
    %254 = vmatpush1.bf16.msra.mxu0 0
    %255 = vmatprep.subr.bf16.mxu0 0
    %256 = vmatpush1.bf16.msra.mxu0 0
    %257 = vmatprep.subr.bf16.mxu0 0
    %258 = vmatpush1.bf16.msra.mxu0 0
    %259 = vmatprep.subr.bf16.mxu0 0
    %260 = vmatpush1.bf16.msra.mxu0 0
    %261 = vmatprep.subr.bf16.mxu0 0
    %262 = vmatpush1.bf16.msra.mxu0 0
    %263 = vmatprep.subr.bf16.mxu0 0
    %264 = vmatpush1.bf16.msra.mxu0 0
    %265 = vmatprep.subr.bf16.mxu0 0
    %266 = vmatpush1.bf16.msra.mxu0 0
    %267 = vmatprep.subr.bf16.mxu0 0
    %268 = vmatpush1.bf16.msra.mxu0 0
    %269 = vmatprep.subr.bf16.mxu0 0
    %270 = vmatpush1.bf16.msra.mxu0 0
    %271 = vmatprep.subr.bf16.mxu0 0
    %272 = vmatpush1.bf16.msra.mxu0 0
    %273 = vmatprep.subr.bf16.mxu0 0
    %274 = vmatpush1.bf16.msra.mxu0 0
    %275 = vmatprep.subr.bf16.mxu0 0
    %276 = vmatpush1.bf16.msra.mxu0 0
    %277 = vmatprep.subr.bf16.mxu0 0
    %278 = vmatpush1.bf16.msra.mxu0 0
    %279 = vmatprep.subr.bf16.mxu0 0
    %280 = vmatpush1.bf16.msra.mxu0 0
    %281 = vmatprep.mubr.bf16.mxu0 0
    %282 = vmatmul.mubr.bf16.gmra.mrb[0].mxu0 %v190
    %v283 = vpop.f32.mrb[0].mxu0
    %v284 = vadd.f32 0.0, %v283
    %v285 = vpop.f32.mrb[0].mxu0
    %v286 = vpop.f32.mrb[0].mxu0
    %v287 = vadd.f32 0.0, %v286
    %v288 = vpop.f32.mrb[0].mxu0
    %289 = vdwg.mxu0
    %v290 = vld [vmem:[%s5] sm:$0xf]
    %v291 = vld [vmem:[%s5 + $0x4] sm:$0xf]
    %v292 = vld [vmem:[%s5 + $0x8] sm:$0xf]
    %v293 = vld [vmem:[%s5 + $0xc] sm:$0xf]
    %v294 = vld [vmem:[%s6] sm:$0x1]
    %v295 = vld [vmem:[%s7] sm:$0x1]
    %v296 = vpack.c.bf16 %v162, %v162
    %v297 = vpack.c.bf16 %v227, %v227
    %v298 = vpack.c.bf16 %v284, %v284
    %vm299 = vcmask 64512
    %v301 = vsel %vm299, %v296, 0
    %v304 = vsel %vm299, %v297, 0
    %306 = vmatprep.subr.bf16.mxu0 0
    %307 = vmatpush1.bf16.xpose.msra.mxu0 %v304
    %308 = vmatprep.subr.bf16.mxu0 0
    %309 = vmatpush1.bf16.xpose.msra.mxu0 0
    %310 = vmatprep.subr.bf16.mxu0 0
    %311 = vmatpush1.bf16.xpose.msra.mxu0 0
    %312 = vmatprep.subr.bf16.mxu0 0
    %313 = vmatpush1.bf16.xpose.msra.mxu0 0
    %314 = vmatprep.subr.bf16.mxu0 0
    %315 = vmatpush1.bf16.xpose.msra.mxu0 0
    %316 = vmatprep.subr.bf16.mxu0 0
    %317 = vmatpush1.bf16.xpose.msra.mxu0 0
    %318 = vmatprep.subr.bf16.mxu0 0
    %319 = vmatpush1.bf16.xpose.msra.mxu0 0
    %320 = vmatprep.subr.bf16.mxu0 0
    %321 = vmatpush1.bf16.xpose.msra.mxu0 0
    %322 = vmatprep.subr.bf16.mxu0 0
    %323 = vmatpush1.bf16.xpose.msra.mxu0 0
    %324 = vmatprep.subr.bf16.mxu0 0
    %325 = vmatpush1.bf16.xpose.msra.mxu0 0
    %326 = vmatprep.subr.bf16.mxu0 0
    %327 = vmatpush1.bf16.xpose.msra.mxu0 0
    %328 = vmatprep.subr.bf16.mxu0 0
    %329 = vmatpush1.bf16.xpose.msra.mxu0 0
    %330 = vmatprep.subr.bf16.mxu0 0
    %331 = vmatpush1.bf16.xpose.msra.mxu0 0
    %332 = vmatprep.subr.bf16.mxu0 0
    %333 = vmatpush1.bf16.xpose.msra.mxu0 0
    %334 = vmatprep.subr.bf16.mxu0 0
    %335 = vmatpush1.bf16.xpose.msra.mxu0 0
    %336 = vmatprep.subr.bf16.mxu0 0
    %337 = vmatpush1.bf16.xpose.msra.mxu0 0
    %338 = vmatprep.mubr.bf16.mxu0 0
    %339 = vmatmul.mubr.bf16.gmra.mrb[0].mxu0 %v301
    %v340 = vpop.f32.mrb[0].mxu0
    %v341 = vadd.f32 0.0, %v340
    %v342 = vpop.f32.mrb[0].mxu0
    %v343 = vpop.f32.mrb[0].mxu0
    %v344 = vpop.f32.mrb[0].mxu0
    %345 = vdwg.mxu0
    %v346 = vsel %vm299, %v341, -inf
    %347 = vmax.xlane.f32.xlu0 %v346
    %v348 = vpop.xlane.xlu0 %347
    %v349 = vsub.f32 %v341, %v348
    %v350 = vmul.f32 %v349, 1.442695
    %v351 = vpow.pop %v350
    %v352 = vsel %vm299, %v351, 0.0
    %353 = vadd.xlane.f32.xlu0 %v352
    %v354 = vpop.xlane.xlu0 %353
    %v355 = vrcp.pop %v354
    %v356 = vmul.f32 %v351, %v355
    %v357 = vpack.c.bf16 %v356, %v356
    %vm358 = vcmask 60416
    %359 = vst.msk [vmem:[#allocation12] sm:$0xf] %vm358, %v357
    %v361 = vsel %vm299, %v357, 0
    %vm363 = vcmask 1043456
    %v365 = vsel %vm363, %v298, 0
    %367 = vmatprep.subr.bf16.mxu0 0
    %368 = vmatpush1.bf16.msra.mxu0 %v365
    %369 = vmatprep.subr.bf16.mxu0 0
    %370 = vmatpush1.bf16.msra.mxu0 0
    %371 = vmatprep.subr.bf16.mxu0 0
    %372 = vmatpush1.bf16.msra.mxu0 0
    %373 = vmatprep.subr.bf16.mxu0 0
    %374 = vmatpush1.bf16.msra.mxu0 0
    %375 = vmatprep.subr.bf16.mxu0 0
    %376 = vmatpush1.bf16.msra.mxu0 0
    %377 = vmatprep.subr.bf16.mxu0 0
    %378 = vmatpush1.bf16.msra.mxu0 0
    %379 = vmatprep.subr.bf16.mxu0 0
    %380 = vmatpush1.bf16.msra.mxu0 0
    %381 = vmatprep.subr.bf16.mxu0 0
    %382 = vmatpush1.bf16.msra.mxu0 0
    %383 = vmatprep.subr.bf16.mxu0 0
    %384 = vmatpush1.bf16.msra.mxu0 0
    %385 = vmatprep.subr.bf16.mxu0 0
    %386 = vmatpush1.bf16.msra.mxu0 0
    %387 = vmatprep.subr.bf16.mxu0 0
    %388 = vmatpush1.bf16.msra.mxu0 0
    %389 = vmatprep.subr.bf16.mxu0 0
    %390 = vmatpush1.bf16.msra.mxu0 0
    %391 = vmatprep.subr.bf16.mxu0 0
    %392 = vmatpush1.bf16.msra.mxu0 0
    %393 = vmatprep.subr.bf16.mxu0 0
    %394 = vmatpush1.bf16.msra.mxu0 0
    %395 = vmatprep.subr.bf16.mxu0 0
    %396 = vmatpush1.bf16.msra.mxu0 0
    %397 = vmatprep.subr.bf16.mxu0 0
    %398 = vmatpush1.bf16.msra.mxu0 0
    %399 = vmatprep.mubr.bf16.mxu0 0
    %400 = vmatmul.mubr.bf16.gmra.mrb[0].mxu0 %v361
    %v401 = vpop.f32.mrb[0].mxu0
    %v402 = vadd.f32 0.0, %v401
    %v403 = vpop.f32.mrb[0].mxu0
    %v404 = vpop.f32.mrb[0].mxu0
    %v405 = vpop.f32.mrb[0].mxu0
    %406 = vdwg.mxu0
    %v407 = vpack.c.bf16 %v402, %v402
    %409 = vrot.lane.b32.xlu0 %v296, 120
    %v410 = vpop.permute.xlu0 %409
    %412 = vrot.lane.b32.xlu0 %v297, 120
    %v413 = vpop.permute.xlu0 %412
    %v415 = vsel %vm299, %v410, 0
    %v418 = vsel %vm299, %v413, 0
    %420 = vmatprep.subr.bf16.mxu0 0
    %421 = vmatpush1.bf16.xpose.msra.mxu0 %v418
    %422 = vmatprep.subr.bf16.mxu0 0
    %423 = vmatpush1.bf16.xpose.msra.mxu0 0
    %424 = vmatprep.subr.bf16.mxu0 0
    %425 = vmatpush1.bf16.xpose.msra.mxu0 0
    %426 = vmatprep.subr.bf16.mxu0 0
    %427 = vmatpush1.bf16.xpose.msra.mxu0 0
    %428 = vmatprep.subr.bf16.mxu0 0
    %429 = vmatpush1.bf16.xpose.msra.mxu0 0
    %430 = vmatprep.subr.bf16.mxu0 0
    %431 = vmatpush1.bf16.xpose.msra.mxu0 0
    %432 = vmatprep.subr.bf16.mxu0 0
    %433 = vmatpush1.bf16.xpose.msra.mxu0 0
    %434 = vmatprep.subr.bf16.mxu0 0
    %435 = vmatpush1.bf16.xpose.msra.mxu0 0
    %436 = vmatprep.subr.bf16.mxu0 0
    %437 = vmatpush1.bf16.xpose.msra.mxu0 0
    %438 = vmatprep.subr.bf16.mxu0 0
    %439 = vmatpush1.bf16.xpose.msra.mxu0 0
    %440 = vmatprep.subr.bf16.mxu0 0
    %441 = vmatpush1.bf16.xpose.msra.mxu0 0
    %442 = vmatprep.subr.bf16.mxu0 0
    %443 = vmatpush1.bf16.xpose.msra.mxu0 0
    %444 = vmatprep.subr.bf16.mxu0 0
    %445 = vmatpush1.bf16.xpose.msra.mxu0 0
    %446 = vmatprep.subr.bf16.mxu0 0
    %447 = vmatpush1.bf16.xpose.msra.mxu0 0
    %448 = vmatprep.subr.bf16.mxu0 0
    %449 = vmatpush1.bf16.xpose.msra.mxu0 0
    %450 = vmatprep.subr.bf16.mxu0 0
    %451 = vmatpush1.bf16.xpose.msra.mxu0 0
    %452 = vmatprep.mubr.bf16.mxu0 0
    %453 = vmatmul.mubr.bf16.gmra.mrb[0].mxu0 %v415
    %v454 = vpop.f32.mrb[0].mxu0
    %v455 = vadd.f32 0.0, %v454
    %v456 = vpop.f32.mrb[0].mxu0
    %v457 = vpop.f32.mrb[0].mxu0
    %v458 = vpop.f32.mrb[0].mxu0
    %459 = vdwg.mxu0
    %v460 = vsel %vm299, %v455, -inf
    %461 = vmax.xlane.f32.xlu0 %v460
    %v462 = vpop.xlane.xlu0 %461
    %v463 = vsub.f32 %v455, %v462
    %v464 = vmul.f32 %v463, 1.442695
    %v465 = vpow.pop %v464
    %v466 = vsel %vm299, %v465, 0.0
    %467 = vadd.xlane.f32.xlu0 %v466
    %v468 = vpop.xlane.xlu0 %467
    %v469 = vrcp.pop %v468
    %v470 = vmul.f32 %v465, %v469
    %v471 = vpack.c.bf16 %v470, %v470
    %s472 = scalar_lea.vmem [#allocation12], 8
    %473 = vst.msk [vmem:[%s472] sm:$0xf] %vm358, %v471
    %475 = vrot.lane.b32.xlu0 %v298, 120
    %v476 = vpop.permute.xlu0 %475
    %v478 = vsel %vm299, %v471, 0
    %v481 = vsel %vm363, %v476, 0
    %483 = vmatprep.subr.bf16.mxu0 0
    %484 = vmatpush1.bf16.msra.mxu0 %v481
    %485 = vmatprep.subr.bf16.mxu0 0
    %486 = vmatpush1.bf16.msra.mxu0 0
    %487 = vmatprep.subr.bf16.mxu0 0
    %488 = vmatpush1.bf16.msra.mxu0 0
    %489 = vmatprep.subr.bf16.mxu0 0
    %490 = vmatpush1.bf16.msra.mxu0 0
    %491 = vmatprep.subr.bf16.mxu0 0
    %492 = vmatpush1.bf16.msra.mxu0 0
    %493 = vmatprep.subr.bf16.mxu0 0
    %494 = vmatpush1.bf16.msra.mxu0 0
    %495 = vmatprep.subr.bf16.mxu0 0
    %496 = vmatpush1.bf16.msra.mxu0 0
    %497 = vmatprep.subr.bf16.mxu0 0
    %498 = vmatpush1.bf16.msra.mxu0 0
    %499 = vmatprep.subr.bf16.mxu0 0
    %500 = vmatpush1.bf16.msra.mxu0 0
    %501 = vmatprep.subr.bf16.mxu0 0
    %502 = vmatpush1.bf16.msra.mxu0 0
    %503 = vmatprep.subr.bf16.mxu0 0
    %504 = vmatpush1.bf16.msra.mxu0 0
    %505 = vmatprep.subr.bf16.mxu0 0
    %506 = vmatpush1.bf16.msra.mxu0 0
    %507 = vmatprep.subr.bf16.mxu0 0
    %508 = vmatpush1.bf16.msra.mxu0 0
    %509 = vmatprep.subr.bf16.mxu0 0
    %510 = vmatpush1.bf16.msra.mxu0 0
    %511 = vmatprep.subr.bf16.mxu0 0
    %512 = vmatpush1.bf16.msra.mxu0 0
    %513 = vmatprep.subr.bf16.mxu0 0
    %514 = vmatpush1.bf16.msra.mxu0 0
    %515 = vmatprep.mubr.bf16.mxu0 0
    %516 = vmatmul.mubr.bf16.gmra.mrb[0].mxu0 %v478
    %v517 = vpop.f32.mrb[0].mxu0
    %v518 = vadd.f32 0.0, %v517
    %v519 = vpop.f32.mrb[0].mxu0
    %v520 = vpop.f32.mrb[0].mxu0
    %v521 = vpop.f32.mrb[0].mxu0
    %522 = vdwg.mxu0
    %v523 = vpack.c.bf16 %v518, %v518
    %v525 = vsel %vm299, %v523, 0
    %v528 = vsel %vm363, %v291, 0
    %530 = vmatprep.subr.bf16.mxu0 0
    %531 = vmatpush1.bf16.msra.mxu0 %v528
    %532 = vmatprep.subr.bf16.mxu0 0
    %533 = vmatpush1.bf16.msra.mxu0 0
    %534 = vmatprep.subr.bf16.mxu0 0
    %535 = vmatpush1.bf16.msra.mxu0 0
    %536 = vmatprep.subr.bf16.mxu0 0
    %537 = vmatpush1.bf16.msra.mxu0 0
    %538 = vmatprep.subr.bf16.mxu0 0
    %539 = vmatpush1.bf16.msra.mxu0 0
    %540 = vmatprep.subr.bf16.mxu0 0
    %541 = vmatpush1.bf16.msra.mxu0 0
    %542 = vmatprep.subr.bf16.mxu0 0
    %543 = vmatpush1.bf16.msra.mxu0 0
    %544 = vmatprep.subr.bf16.mxu0 0
    %545 = vmatpush1.bf16.msra.mxu0 0
    %546 = vmatprep.subr.bf16.mxu0 0
    %547 = vmatpush1.bf16.msra.mxu0 0
    %548 = vmatprep.subr.bf16.mxu0 0
    %549 = vmatpush1.bf16.msra.mxu0 0
    %550 = vmatprep.subr.bf16.mxu0 0
    %551 = vmatpush1.bf16.msra.mxu0 0
    %552 = vmatprep.subr.bf16.mxu0 0
    %553 = vmatpush1.bf16.msra.mxu0 0
    %554 = vmatprep.subr.bf16.mxu0 0
    %555 = vmatpush1.bf16.msra.mxu0 0
    %556 = vmatprep.subr.bf16.mxu0 0
    %557 = vmatpush1.bf16.msra.mxu0 0
    %558 = vmatprep.subr.bf16.mxu0 0
    %559 = vmatpush1.bf16.msra.mxu0 0
    %560 = vmatprep.subr.bf16.mxu0 0
    %561 = vmatpush1.bf16.msra.mxu0 0
    %562 = vmatprep.mubr.bf16.mxu0 0
    %563 = vmatmul.mubr.bf16.gmra.mrb[0].mxu0 %v525
    %v564 = vpop.f32.mrb[0].mxu0
    %v565 = vadd.f32 0.0, %v564
    %v566 = vpop.f32.mrb[0].mxu0
    %v567 = vpop.f32.mrb[0].mxu0
    %v568 = vpop.f32.mrb[0].mxu0
    %569 = vdwg.mxu0
    %v571 = vsel %vm299, %v407, 0
    %v574 = vsel %vm363, %v290, 0
    %576 = vmatprep.subr.bf16.mxu0 0
    %577 = vmatpush1.bf16.msra.mxu0 %v574
    %578 = vmatprep.subr.bf16.mxu0 0
    %579 = vmatpush1.bf16.msra.mxu0 0
    %580 = vmatprep.subr.bf16.mxu0 0
    %581 = vmatpush1.bf16.msra.mxu0 0
    %582 = vmatprep.subr.bf16.mxu0 0
    %583 = vmatpush1.bf16.msra.mxu0 0
    %584 = vmatprep.subr.bf16.mxu0 0
    %585 = vmatpush1.bf16.msra.mxu0 0
    %586 = vmatprep.subr.bf16.mxu0 0
    %587 = vmatpush1.bf16.msra.mxu0 0
    %588 = vmatprep.subr.bf16.mxu0 0
    %589 = vmatpush1.bf16.msra.mxu0 0
    %590 = vmatprep.subr.bf16.mxu0 0
    %591 = vmatpush1.bf16.msra.mxu0 0
    %592 = vmatprep.subr.bf16.mxu0 0
    %593 = vmatpush1.bf16.msra.mxu0 0
    %594 = vmatprep.subr.bf16.mxu0 0
    %595 = vmatpush1.bf16.msra.mxu0 0
    %596 = vmatprep.subr.bf16.mxu0 0
    %597 = vmatpush1.bf16.msra.mxu0 0
    %598 = vmatprep.subr.bf16.mxu0 0
    %599 = vmatpush1.bf16.msra.mxu0 0
    %600 = vmatprep.subr.bf16.mxu0 0
    %601 = vmatpush1.bf16.msra.mxu0 0
    %602 = vmatprep.subr.bf16.mxu0 0
    %603 = vmatpush1.bf16.msra.mxu0 0
    %604 = vmatprep.subr.bf16.mxu0 0
    %605 = vmatpush1.bf16.msra.mxu0 0
    %606 = vmatprep.subr.bf16.mxu0 0
    %607 = vmatpush1.bf16.msra.mxu0 0
    %608 = vmatprep.mubr.bf16.mxu0 0
    %609 = vmatmul.mubr.bf16.gmra.mrb[0].mxu0 %v571
    %v610 = vpop.f32.mrb[0].mxu0
    %v611 = vadd.f32 %v565, %v610
    %v612 = vpop.f32.mrb[0].mxu0
    %v613 = vpop.f32.mrb[0].mxu0
    %v614 = vpop.f32.mrb[0].mxu0
    %615 = vdwg.mxu0
    %616 = vrot.lane.b32.xlu0 %v296, 112
    %v617 = vpop.permute.xlu0 %616
    %618 = vrot.lane.b32.xlu0 %v297, 112
    %v619 = vpop.permute.xlu0 %618
    %v621 = vsel %vm299, %v617, 0
    %v624 = vsel %vm299, %v619, 0
    %626 = vmatprep.subr.bf16.mxu0 0
    %627 = vmatpush1.bf16.xpose.msra.mxu0 %v624
    %628 = vmatprep.subr.bf16.mxu0 0
    %629 = vmatpush1.bf16.xpose.msra.mxu0 0
    %630 = vmatprep.subr.bf16.mxu0 0
    %631 = vmatpush1.bf16.xpose.msra.mxu0 0
    %632 = vmatprep.subr.bf16.mxu0 0
    %633 = vmatpush1.bf16.xpose.msra.mxu0 0
    %634 = vmatprep.subr.bf16.mxu0 0
    %635 = vmatpush1.bf16.xpose.msra.mxu0 0
    %636 = vmatprep.subr.bf16.mxu0 0
    %637 = vmatpush1.bf16.xpose.msra.mxu0 0
    %638 = vmatprep.subr.bf16.mxu0 0
    %639 = vmatpush1.bf16.xpose.msra.mxu0 0
    %640 = vmatprep.subr.bf16.mxu0 0
    %641 = vmatpush1.bf16.xpose.msra.mxu0 0
    %642 = vmatprep.subr.bf16.mxu0 0
    %643 = vmatpush1.bf16.xpose.msra.mxu0 0
    %644 = vmatprep.subr.bf16.mxu0 0
    %645 = vmatpush1.bf16.xpose.msra.mxu0 0
    %646 = vmatprep.subr.bf16.mxu0 0
    %647 = vmatpush1.bf16.xpose.msra.mxu0 0
    %648 = vmatprep.subr.bf16.mxu0 0
    %649 = vmatpush1.bf16.xpose.msra.mxu0 0
    %650 = vmatprep.subr.bf16.mxu0 0
    %651 = vmatpush1.bf16.xpose.msra.mxu0 0
    %652 = vmatprep.subr.bf16.mxu0 0
    %653 = vmatpush1.bf16.xpose.msra.mxu0 0
    %654 = vmatprep.subr.bf16.mxu0 0
    %655 = vmatpush1.bf16.xpose.msra.mxu0 0
    %656 = vmatprep.subr.bf16.mxu0 0
    %657 = vmatpush1.bf16.xpose.msra.mxu0 0
    %658 = vmatprep.mubr.bf16.mxu0 0
    %659 = vmatmul.mubr.bf16.gmra.mrb[0].mxu0 %v621
    %v660 = vpop.f32.mrb[0].mxu0
    %v661 = vadd.f32 0.0, %v660
    %v662 = vpop.f32.mrb[0].mxu0
    %v663 = vpop.f32.mrb[0].mxu0
    %v664 = vpop.f32.mrb[0].mxu0
    %665 = vdwg.mxu0
    %v666 = vsel %vm299, %v661, -inf
    %667 = vmax.xlane.f32.xlu0 %v666
    %v668 = vpop.xlane.xlu0 %667
    %v669 = vsub.f32 %v661, %v668
    %v670 = vmul.f32 %v669, 1.442695
    %v671 = vpow.pop %v670
    %v672 = vsel %vm299, %v671, 0.0
    %673 = vadd.xlane.f32.xlu0 %v672
    %v674 = vpop.xlane.xlu0 %673
    %v675 = vrcp.pop %v674
    %v676 = vmul.f32 %v671, %v675
    %v677 = vpack.c.bf16 %v676, %v676
    %s678 = scalar_lea.vmem [#allocation12], 16
    %679 = vst.msk [vmem:[%s678] sm:$0xf] %vm358, %v677
    %680 = vrot.lane.b32.xlu0 %v298, 112
    %v681 = vpop.permute.xlu0 %680
    %v683 = vsel %vm299, %v677, 0
    %v686 = vsel %vm363, %v681, 0
    %688 = vmatprep.subr.bf16.mxu0 0
    %689 = vmatpush1.bf16.msra.mxu0 %v686
    %690 = vmatprep.subr.bf16.mxu0 0
    %691 = vmatpush1.bf16.msra.mxu0 0
    %692 = vmatprep.subr.bf16.mxu0 0
    %693 = vmatpush1.bf16.msra.mxu0 0
    %694 = vmatprep.subr.bf16.mxu0 0
    %695 = vmatpush1.bf16.msra.mxu0 0
    %696 = vmatprep.subr.bf16.mxu0 0
    %697 = vmatpush1.bf16.msra.mxu0 0
    %698 = vmatprep.subr.bf16.mxu0 0
    %699 = vmatpush1.bf16.msra.mxu0 0
    %700 = vmatprep.subr.bf16.mxu0 0
    %701 = vmatpush1.bf16.msra.mxu0 0
    %702 = vmatprep.subr.bf16.mxu0 0
    %703 = vmatpush1.bf16.msra.mxu0 0
    %704 = vmatprep.subr.bf16.mxu0 0
    %705 = vmatpush1.bf16.msra.mxu0 0
    %706 = vmatprep.subr.bf16.mxu0 0
    %707 = vmatpush1.bf16.msra.mxu0 0
    %708 = vmatprep.subr.bf16.mxu0 0
    %709 = vmatpush1.bf16.msra.mxu0 0
    %710 = vmatprep.subr.bf16.mxu0 0
    %711 = vmatpush1.bf16.msra.mxu0 0
    %712 = vmatprep.subr.bf16.mxu0 0
    %713 = vmatpush1.bf16.msra.mxu0 0
    %714 = vmatprep.subr.bf16.mxu0 0
    %715 = vmatpush1.bf16.msra.mxu0 0
    %716 = vmatprep.subr.bf16.mxu0 0
    %717 = vmatpush1.bf16.msra.mxu0 0
    %718 = vmatprep.subr.bf16.mxu0 0
    %719 = vmatpush1.bf16.msra.mxu0 0
    %720 = vmatprep.mubr.bf16.mxu0 0
    %721 = vmatmul.mubr.bf16.gmra.mrb[0].mxu0 %v683
    %v722 = vpop.f32.mrb[0].mxu0
    %v723 = vadd.f32 0.0, %v722
    %v724 = vpop.f32.mrb[0].mxu0
    %v725 = vpop.f32.mrb[0].mxu0
    %v726 = vpop.f32.mrb[0].mxu0
    %727 = vdwg.mxu0
    %v728 = vpack.c.bf16 %v723, %v723
    %v730 = vsel %vm299, %v728, 0
    %v733 = vsel %vm363, %v292, 0
    %735 = vmatprep.subr.bf16.mxu0 0
    %736 = vmatpush1.bf16.msra.mxu0 %v733
    %737 = vmatprep.subr.bf16.mxu0 0
    %738 = vmatpush1.bf16.msra.mxu0 0
    %739 = vmatprep.subr.bf16.mxu0 0
    %740 = vmatpush1.bf16.msra.mxu0 0
    %741 = vmatprep.subr.bf16.mxu0 0
    %742 = vmatpush1.bf16.msra.mxu0 0
    %743 = vmatprep.subr.bf16.mxu0 0
    %744 = vmatpush1.bf16.msra.mxu0 0
    %745 = vmatprep.subr.bf16.mxu0 0
    %746 = vmatpush1.bf16.msra.mxu0 0
    %747 = vmatprep.subr.bf16.mxu0 0
    %748 = vmatpush1.bf16.msra.mxu0 0
    %749 = vmatprep.subr.bf16.mxu0 0
    %750 = vmatpush1.bf16.msra.mxu0 0
    %751 = vmatprep.subr.bf16.mxu0 0
    %752 = vmatpush1.bf16.msra.mxu0 0
    %753 = vmatprep.subr.bf16.mxu0 0
    %754 = vmatpush1.bf16.msra.mxu0 0
    %755 = vmatprep.subr.bf16.mxu0 0
    %756 = vmatpush1.bf16.msra.mxu0 0
    %757 = vmatprep.subr.bf16.mxu0 0
    %758 = vmatpush1.bf16.msra.mxu0 0
    %759 = vmatprep.subr.bf16.mxu0 0
    %760 = vmatpush1.bf16.msra.mxu0 0
    %761 = vmatprep.subr.bf16.mxu0 0
    %762 = vmatpush1.bf16.msra.mxu0 0
    %763 = vmatprep.subr.bf16.mxu0 0
    %764 = vmatpush1.bf16.msra.mxu0 0
    %765 = vmatprep.subr.bf16.mxu0 0
    %766 = vmatpush1.bf16.msra.mxu0 0
    %767 = vmatprep.mubr.bf16.mxu0 0
    %768 = vmatmul.mubr.bf16.gmra.mrb[0].mxu0 %v730
    %v769 = vpop.f32.mrb[0].mxu0
    %v770 = vadd.f32 0.0, %v769
    %v771 = vpop.f32.mrb[0].mxu0
    %v772 = vpop.f32.mrb[0].mxu0
    %v773 = vpop.f32.mrb[0].mxu0
    %774 = vdwg.mxu0
    %v775 = vadd.f32 %v611, %v770
    %776 = vrot.lane.b32.xlu0 %v296, 104
    %v777 = vpop.permute.xlu0 %776
    %778 = vrot.lane.b32.xlu0 %v297, 104
    %v779 = vpop.permute.xlu0 %778
    %v781 = vsel %vm299, %v777, 0
    %v784 = vsel %vm299, %v779, 0
    %786 = vmatprep.subr.bf16.mxu0 0
    %787 = vmatpush1.bf16.xpose.msra.mxu0 %v784
    %788 = vmatprep.subr.bf16.mxu0 0
    %789 = vmatpush1.bf16.xpose.msra.mxu0 0
    %790 = vmatprep.subr.bf16.mxu0 0
    %791 = vmatpush1.bf16.xpose.msra.mxu0 0
    %792 = vmatprep.subr.bf16.mxu0 0
    %793 = vmatpush1.bf16.xpose.msra.mxu0 0
    %794 = vmatprep.subr.bf16.mxu0 0
    %795 = vmatpush1.bf16.xpose.msra.mxu0 0
    %796 = vmatprep.subr.bf16.mxu0 0
    %797 = vmatpush1.bf16.xpose.msra.mxu0 0
    %798 = vmatprep.subr.bf16.mxu0 0
    %799 = vmatpush1.bf16.xpose.msra.mxu0 0
    %800 = vmatprep.subr.bf16.mxu0 0
    %801 = vmatpush1.bf16.xpose.msra.mxu0 0
    %802 = vmatprep.subr.bf16.mxu0 0
    %803 = vmatpush1.bf16.xpose.msra.mxu0 0
    %804 = vmatprep.subr.bf16.mxu0 0
    %805 = vmatpush1.bf16.xpose.msra.mxu0 0
    %806 = vmatprep.subr.bf16.mxu0 0
    %807 = vmatpush1.bf16.xpose.msra.mxu0 0
    %808 = vmatprep.subr.bf16.mxu0 0
    %809 = vmatpush1.bf16.xpose.msra.mxu0 0
    %810 = vmatprep.subr.bf16.mxu0 0
    %811 = vmatpush1.bf16.xpose.msra.mxu0 0
    %812 = vmatprep.subr.bf16.mxu0 0
    %813 = vmatpush1.bf16.xpose.msra.mxu0 0
    %814 = vmatprep.subr.bf16.mxu0 0
    %815 = vmatpush1.bf16.xpose.msra.mxu0 0
    %816 = vmatprep.subr.bf16.mxu0 0
    %817 = vmatpush1.bf16.xpose.msra.mxu0 0
    %818 = vmatprep.mubr.bf16.mxu0 0
    %819 = vmatmul.mubr.bf16.gmra.mrb[0].mxu0 %v781
    %v820 = vpop.f32.mrb[0].mxu0
    %v821 = vadd.f32 0.0, %v820
    %v822 = vpop.f32.mrb[0].mxu0
    %v823 = vpop.f32.mrb[0].mxu0
    %v824 = vpop.f32.mrb[0].mxu0
    %825 = vdwg.mxu0
    %v826 = vsel %vm299, %v821, -inf
    %827 = vmax.xlane.f32.xlu0 %v826
    %v828 = vpop.xlane.xlu0 %827
    %v829 = vsub.f32 %v821, %v828
    %v830 = vmul.f32 %v829, 1.442695
    %v831 = vpow.pop %v830
    %v832 = vsel %vm299, %v831, 0.0
    %833 = vadd.xlane.f32.xlu0 %v832
    %v834 = vpop.xlane.xlu0 %833
    %v835 = vrcp.pop %v834
    %v836 = vmul.f32 %v831, %v835
    %v837 = vpack.c.bf16 %v836, %v836
    %s838 = scalar_lea.vmem [#allocation12], 24
    %839 = vst.msk [vmem:[%s838] sm:$0xf] %vm358, %v837
    %840 = vrot.lane.b32.xlu0 %v298, 104
    %v841 = vpop.permute.xlu0 %840
    %v843 = vsel %vm299, %v837, 0
    %v846 = vsel %vm363, %v841, 0
    %848 = vmatprep.subr.bf16.mxu0 0
    %849 = vmatpush1.bf16.msra.mxu0 %v846
    %850 = vmatprep.subr.bf16.mxu0 0
    %851 = vmatpush1.bf16.msra.mxu0 0
    %852 = vmatprep.subr.bf16.mxu0 0
    %853 = vmatpush1.bf16.msra.mxu0 0
    %854 = vmatprep.subr.bf16.mxu0 0
    %855 = vmatpush1.bf16.msra.mxu0 0
    %856 = vmatprep.subr.bf16.mxu0 0
    %857 = vmatpush1.bf16.msra.mxu0 0
    %858 = vmatprep.subr.bf16.mxu0 0
    %859 = vmatpush1.bf16.msra.mxu0 0
    %860 = vmatprep.subr.bf16.mxu0 0
    %861 = vmatpush1.bf16.msra.mxu0 0
    %862 = vmatprep.subr.bf16.mxu0 0
    %863 = vmatpush1.bf16.msra.mxu0 0
    %864 = vmatprep.subr.bf16.mxu0 0
    %865 = vmatpush1.bf16.msra.mxu0 0
    %866 = vmatprep.subr.bf16.mxu0 0
    %867 = vmatpush1.bf16.msra.mxu0 0
    %868 = vmatprep.subr.bf16.mxu0 0
    %869 = vmatpush1.bf16.msra.mxu0 0
    %870 = vmatprep.subr.bf16.mxu0 0
    %871 = vmatpush1.bf16.msra.mxu0 0
    %872 = vmatprep.subr.bf16.mxu0 0
    %873 = vmatpush1.bf16.msra.mxu0 0
    %874 = vmatprep.subr.bf16.mxu0 0
    %875 = vmatpush1.bf16.msra.mxu0 0
    %876 = vmatprep.subr.bf16.mxu0 0
    %877 = vmatpush1.bf16.msra.mxu0 0
    %878 = vmatprep.subr.bf16.mxu0 0
    %879 = vmatpush1.bf16.msra.mxu0 0
    %880 = vmatprep.mubr.bf16.mxu0 0
    %881 = vmatmul.mubr.bf16.gmra.mrb[0].mxu0 %v843
    %v882 = vpop.f32.mrb[0].mxu0
    %v883 = vadd.f32 0.0, %v882
    %v884 = vpop.f32.mrb[0].mxu0
    %v885 = vpop.f32.mrb[0].mxu0
    %v886 = vpop.f32.mrb[0].mxu0
    %887 = vdwg.mxu0
    %v888 = vpack.c.bf16 %v883, %v883
    %v890 = vsel %vm299, %v888, 0
    %v893 = vsel %vm363, %v293, 0
    %895 = vmatprep.subr.bf16.mxu0 0
    %896 = vmatpush1.bf16.msra.mxu0 %v893
    %897 = vmatprep.subr.bf16.mxu0 0
    %898 = vmatpush1.bf16.msra.mxu0 0
    %899 = vmatprep.subr.bf16.mxu0 0
    %900 = vmatpush1.bf16.msra.mxu0 0
    %901 = vmatprep.subr.bf16.mxu0 0
    %902 = vmatpush1.bf16.msra.mxu0 0
    %903 = vmatprep.subr.bf16.mxu0 0
    %904 = vmatpush1.bf16.msra.mxu0 0
    %905 = vmatprep.subr.bf16.mxu0 0
    %906 = vmatpush1.bf16.msra.mxu0 0
    %907 = vmatprep.subr.bf16.mxu0 0
    %908 = vmatpush1.bf16.msra.mxu0 0
    %909 = vmatprep.subr.bf16.mxu0 0
    %910 = vmatpush1.bf16.msra.mxu0 0
    %911 = vmatprep.subr.bf16.mxu0 0
    %912 = vmatpush1.bf16.msra.mxu0 0
    %913 = vmatprep.subr.bf16.mxu0 0
    %914 = vmatpush1.bf16.msra.mxu0 0
    %915 = vmatprep.subr.bf16.mxu0 0
    %916 = vmatpush1.bf16.msra.mxu0 0
    %917 = vmatprep.subr.bf16.mxu0 0
    %918 = vmatpush1.bf16.msra.mxu0 0
    %919 = vmatprep.subr.bf16.mxu0 0
    %920 = vmatpush1.bf16.msra.mxu0 0
    %921 = vmatprep.subr.bf16.mxu0 0
    %922 = vmatpush1.bf16.msra.mxu0 0
    %923 = vmatprep.subr.bf16.mxu0 0
    %924 = vmatpush1.bf16.msra.mxu0 0
    %925 = vmatprep.subr.bf16.mxu0 0
    %926 = vmatpush1.bf16.msra.mxu0 0
    %927 = vmatprep.mubr.bf16.mxu0 0
    %928 = vmatmul.mubr.bf16.gmra.mrb[0].mxu0 %v890
    %v929 = vpop.f32.mrb[0].mxu0
    %v930 = vadd.f32 0.0, %v929
    %v931 = vpop.f32.mrb[0].mxu0
    %v932 = vpop.f32.mrb[0].mxu0
    %v933 = vpop.f32.mrb[0].mxu0
    %934 = vdwg.mxu0
    %v935 = vadd.f32 %v775, %v930
    %v936 = vadd.f32 %v935, %v104
    %v937 = vsel %vm123, %v936, 0.0
    %938 = vadd.xlane.f32.xlu0 %v937
    %v939 = vpop.xlane.xlu0 %938
    %v940 = vrcp.pop 32.0
    %v941 = vmul.f32 %v939, %v940
    %v942 = vsub.f32 %v936, %v941
    %v943 = vmul.f32 %v942, %v942
    %v944 = vsel %vm123, %v943, 0.0
    %945 = vadd.xlane.f32.xlu0 %v944
    %v946 = vpop.xlane.xlu0 %945
    %v947 = vmul.f32 %v946, %v940
    %v948 = vadd.f32 %v947, 1e-05
    %v949 = vrsqrt.pop %v948
    %v950 = vmul.f32 %v942, %v949
    %v952 = vlaneseq
    %v953 = vshrl.u32 %v952, 7
    %v954 = vsub.s32 0, %v953
    %v955 = vrot.slane %v294, %v954
    %v957 = vmul.f32 %v950, %v955
    %v959 = vlaneseq
    %v960 = vshrl.u32 %v959, 7
    %v961 = vsub.s32 0, %v960
    %v962 = vrot.slane %v295, %v961
    %v964 = vadd.f32 %v957, %v962
    %965 = vst.msk [vmem:[#allocation11] sm:$0xff] %vm123, %v964
    %v966 = vpack.c.bf16 %v165, %v165
    %v967 = vpack.c.bf16 %v230, %v230
    %v968 = vpack.c.bf16 %v287, %v287
    %v970 = vsel %vm299, %v966, 0
    %v973 = vsel %vm299, %v967, 0
    %975 = vmatprep.subr.bf16.mxu0 0
    %976 = vmatpush1.bf16.xpose.msra.mxu0 %v973
    %977 = vmatprep.subr.bf16.mxu0 0
    %978 = vmatpush1.bf16.xpose.msra.mxu0 0
    %979 = vmatprep.subr.bf16.mxu0 0
    %980 = vmatpush1.bf16.xpose.msra.mxu0 0
    %981 = vmatprep.subr.bf16.mxu0 0
    %982 = vmatpush1.bf16.xpose.msra.mxu0 0
    %983 = vmatprep.subr.bf16.mxu0 0
    %984 = vmatpush1.bf16.xpose.msra.mxu0 0
    %985 = vmatprep.subr.bf16.mxu0 0
    %986 = vmatpush1.bf16.xpose.msra.mxu0 0
    %987 = vmatprep.subr.bf16.mxu0 0
    %988 = vmatpush1.bf16.xpose.msra.mxu0 0
    %989 = vmatprep.subr.bf16.mxu0 0
    %990 = vmatpush1.bf16.xpose.msra.mxu0 0
    %991 = vmatprep.subr.bf16.mxu0 0
    %992 = vmatpush1.bf16.xpose.msra.mxu0 0
    %993 = vmatprep.subr.bf16.mxu0 0
    %994 = vmatpush1.bf16.xpose.msra.mxu0 0
    %995 = vmatprep.subr.bf16.mxu0 0
    %996 = vmatpush1.bf16.xpose.msra.mxu0 0
    %997 = vmatprep.subr.bf16.mxu0 0
    %998 = vmatpush1.bf16.xpose.msra.mxu0 0
    %999 = vmatprep.subr.bf16.mxu0 0
    %1000 = vmatpush1.bf16.xpose.msra.mxu0 0
    %1001 = vmatprep.subr.bf16.mxu0 0
    %1002 = vmatpush1.bf16.xpose.msra.mxu0 0
    %1003 = vmatprep.subr.bf16.mxu0 0
    %1004 = vmatpush1.bf16.xpose.msra.mxu0 0
    %1005 = vmatprep.subr.bf16.mxu0 0
    %1006 = vmatpush1.bf16.xpose.msra.mxu0 0
    %1007 = vmatprep.mubr.bf16.mxu0 0
    %1008 = vmatmul.mubr.bf16.gmra.mrb[0].mxu0 %v970
    %v1009 = vpop.f32.mrb[0].mxu0
    %v1010 = vadd.f32 0.0, %v1009
    %v1011 = vpop.f32.mrb[0].mxu0
    %v1012 = vpop.f32.mrb[0].mxu0
    %v1013 = vpop.f32.mrb[0].mxu0
    %1014 = vdwg.mxu0
    %v1015 = vsel %vm299, %v1010, -inf
    %1016 = vmax.xlane.f32.xlu0 %v1015
    %v1017 = vpop.xlane.xlu0 %1016
    %v1018 = vsub.f32 %v1010, %v1017
    %v1019 = vmul.f32 %v1018, 1.442695
    %v1020 = vpow.pop %v1019
    %v1021 = vsel %vm299, %v1020, 0.0
    %1022 = vadd.xlane.f32.xlu0 %v1021
    %v1023 = vpop.xlane.xlu0 %1022
    %v1024 = vrcp.pop %v1023
    %v1025 = vmul.f32 %v1020, %v1024
    %v1026 = vpack.c.bf16 %v1025, %v1025
    %s1027 = scalar_lea.vmem [#allocation12], 4
    %1028 = vst.msk [vmem:[%s1027] sm:$0xf] %vm358, %v1026
    %v1030 = vsel %vm299, %v1026, 0
    %v1033 = vsel %vm363, %v968, 0
    %1035 = vmatprep.subr.bf16.mxu0 0
    %1036 = vmatpush1.bf16.msra.mxu0 %v1033
    %1037 = vmatprep.subr.bf16.mxu0 0
    %1038 = vmatpush1.bf16.msra.mxu0 0
    %1039 = vmatprep.subr.bf16.mxu0 0
    %1040 = vmatpush1.bf16.msra.mxu0 0
    %1041 = vmatprep.subr.bf16.mxu0 0
    %1042 = vmatpush1.bf16.msra.mxu0 0
    %1043 = vmatprep.subr.bf16.mxu0 0
    %1044 = vmatpush1.bf16.msra.mxu0 0
    %1045 = vmatprep.subr.bf16.mxu0 0
    %1046 = vmatpush1.bf16.msra.mxu0 0
    %1047 = vmatprep.subr.bf16.mxu0 0
    %1048 = vmatpush1.bf16.msra.mxu0 0
    %1049 = vmatprep.subr.bf16.mxu0 0
    %1050 = vmatpush1.bf16.msra.mxu0 0
    %1051 = vmatprep.subr.bf16.mxu0 0
    %1052 = vmatpush1.bf16.msra.mxu0 0
    %1053 = vmatprep.subr.bf16.mxu0 0
    %1054 = vmatpush1.bf16.msra.mxu0 0
    %1055 = vmatprep.subr.bf16.mxu0 0
    %1056 = vmatpush1.bf16.msra.mxu0 0
    %1057 = vmatprep.subr.bf16.mxu0 0
    %1058 = vmatpush1.bf16.msra.mxu0 0
    %1059 = vmatprep.subr.bf16.mxu0 0
    %1060 = vmatpush1.bf16.msra.mxu0 0
    %1061 = vmatprep.subr.bf16.mxu0 0
    %1062 = vmatpush1.bf16.msra.mxu0 0
    %1063 = vmatprep.subr.bf16.mxu0 0
    %1064 = vmatpush1.bf16.msra.mxu0 0
    %1065 = vmatprep.subr.bf16.mxu0 0
    %1066 = vmatpush1.bf16.msra.mxu0 0
    %1067 = vmatprep.mubr.bf16.mxu0 0
    %1068 = vmatmul.mubr.bf16.gmra.mrb[0].mxu0 %v1030
    %v1069 = vpop.f32.mrb[0].mxu0
    %v1070 = vadd.f32 0.0, %v1069
    %v1071 = vpop.f32.mrb[0].mxu0
    %v1072 = vpop.f32.mrb[0].mxu0
    %v1073 = vpop.f32.mrb[0].mxu0
    %1074 = vdwg.mxu0
    %v1075 = vpack.c.bf16 %v1070, %v1070
    %1077 = vrot.lane.b32.xlu0 %v966, 120
    %v1078 = vpop.permute.xlu0 %1077
    %1080 = vrot.lane.b32.xlu0 %v967, 120
    %v1081 = vpop.permute.xlu0 %1080
    %v1083 = vsel %vm299, %v1078, 0
    %v1086 = vsel %vm299, %v1081, 0
    %1088 = vmatprep.subr.bf16.mxu0 0
    %1089 = vmatpush1.bf16.xpose.msra.mxu0 %v1086
    %1090 = vmatprep.subr.bf16.mxu0 0
    %1091 = vmatpush1.bf16.xpose.msra.mxu0 0
    %1092 = vmatprep.subr.bf16.mxu0 0
    %1093 = vmatpush1.bf16.xpose.msra.mxu0 0
    %1094 = vmatprep.subr.bf16.mxu0 0
    %1095 = vmatpush1.bf16.xpose.msra.mxu0 0
    %1096 = vmatprep.subr.bf16.mxu0 0
    %1097 = vmatpush1.bf16.xpose.msra.mxu0 0
    %1098 = vmatprep.subr.bf16.mxu0 0
    %1099 = vmatpush1.bf16.xpose.msra.mxu0 0
    %1100 = vmatprep.subr.bf16.mxu0 0
    %1101 = vmatpush1.bf16.xpose.msra.mxu0 0
    %1102 = vmatprep.subr.bf16.mxu0 0
    %1103 = vmatpush1.bf16.xpose.msra.mxu0 0
    %1104 = vmatprep.subr.bf16.mxu0 0
    %1105 = vmatpush1.bf16.xpose.msra.mxu0 0
    %1106 = vmatprep.subr.bf16.mxu0 0
    %1107 = vmatpush1.bf16.xpose.msra.mxu0 0
    %1108 = vmatprep.subr.bf16.mxu0 0
    %1109 = vmatpush1.bf16.xpose.msra.mxu0 0
    %1110 = vmatprep.subr.bf16.mxu0 0
    %1111 = vmatpush1.bf16.xpose.msra.mxu0 0
    %1112 = vmatprep.subr.bf16.mxu0 0
    %1113 = vmatpush1.bf16.xpose.msra.mxu0 0
    %1114 = vmatprep.subr.bf16.mxu0 0
    %1115 = vmatpush1.bf16.xpose.msra.mxu0 0
    %1116 = vmatprep.subr.bf16.mxu0 0
    %1117 = vmatpush1.bf16.xpose.msra.mxu0 0
    %1118 = vmatprep.subr.bf16.mxu0 0
    %1119 = vmatpush1.bf16.xpose.msra.mxu0 0
    %1120 = vmatprep.mubr.bf16.mxu0 0
    %1121 = vmatmul.mubr.bf16.gmra.mrb[0].mxu0 %v1083
    %v1122 = vpop.f32.mrb[0].mxu0
    %v1123 = vadd.f32 0.0, %v1122
    %v1124 = vpop.f32.mrb[0].mxu0
    %v1125 = vpop.f32.mrb[0].mxu0
    %v1126 = vpop.f32.mrb[0].mxu0
    %1127 = vdwg.mxu0
    %v1128 = vsel %vm299, %v1123, -inf
    %1129 = vmax.xlane.f32.xlu0 %v1128
    %v1130 = vpop.xlane.xlu0 %1129
    %v1131 = vsub.f32 %v1123, %v1130
    %v1132 = vmul.f32 %v1131, 1.442695
    %v1133 = vpow.pop %v1132
    %v1134 = vsel %vm299, %v1133, 0.0
    %1135 = vadd.xlane.f32.xlu0 %v1134
    %v1136 = vpop.xlane.xlu0 %1135
    %v1137 = vrcp.pop %v1136
    %v1138 = vmul.f32 %v1133, %v1137
    %v1139 = vpack.c.bf16 %v1138, %v1138
    %s1140 = scalar_lea.vmem [#allocation12], 12
    %1141 = vst.msk [vmem:[%s1140] sm:$0xf] %vm358, %v1139
    %1143 = vrot.lane.b32.xlu0 %v968, 120
    %v1144 = vpop.permute.xlu0 %1143
    %v1146 = vsel %vm299, %v1139, 0
    %v1149 = vsel %vm363, %v1144, 0
    %1151 = vmatprep.subr.bf16.mxu0 0
    %1152 = vmatpush1.bf16.msra.mxu0 %v1149
    %1153 = vmatprep.subr.bf16.mxu0 0
    %1154 = vmatpush1.bf16.msra.mxu0 0
    %1155 = vmatprep.subr.bf16.mxu0 0
    %1156 = vmatpush1.bf16.msra.mxu0 0
    %1157 = vmatprep.subr.bf16.mxu0 0
    %1158 = vmatpush1.bf16.msra.mxu0 0
    %1159 = vmatprep.subr.bf16.mxu0 0
    %1160 = vmatpush1.bf16.msra.mxu0 0
    %1161 = vmatprep.subr.bf16.mxu0 0
    %1162 = vmatpush1.bf16.msra.mxu0 0
    %1163 = vmatprep.subr.bf16.mxu0 0
    %1164 = vmatpush1.bf16.msra.mxu0 0
    %1165 = vmatprep.subr.bf16.mxu0 0
    %1166 = vmatpush1.bf16.msra.mxu0 0
    %1167 = vmatprep.subr.bf16.mxu0 0
    %1168 = vmatpush1.bf16.msra.mxu0 0
    %1169 = vmatprep.subr.bf16.mxu0 0
    %1170 = vmatpush1.bf16.msra.mxu0 0
    %1171 = vmatprep.subr.bf16.mxu0 0
    %1172 = vmatpush1.bf16.msra.mxu0 0
    %1173 = vmatprep.subr.bf16.mxu0 0
    %1174 = vmatpush1.bf16.msra.mxu0 0
    %1175 = vmatprep.subr.bf16.mxu0 0
    %1176 = vmatpush1.bf16.msra.mxu0 0
    %1177 = vmatprep.subr.bf16.mxu0 0
    %1178 = vmatpush1.bf16.msra.mxu0 0
    %1179 = vmatprep.subr.bf16.mxu0 0
    %1180 = vmatpush1.bf16.msra.mxu0 0
    %1181 = vmatprep.subr.bf16.mxu0 0
    %1182 = vmatpush1.bf16.msra.mxu0 0
    %1183 = vmatprep.mubr.bf16.mxu0 0
    %1184 = vmatmul.mubr.bf16.gmra.mrb[0].mxu0 %v1146
    %v1185 = vpop.f32.mrb[0].mxu0
    %v1186 = vadd.f32 0.0, %v1185
    %v1187 = vpop.f32.mrb[0].mxu0
    %v1188 = vpop.f32.mrb[0].mxu0
    %v1189 = vpop.f32.mrb[0].mxu0
    %1190 = vdwg.mxu0
    %v1191 = vpack.c.bf16 %v1186, %v1186
    %v1193 = vsel %vm299, %v1191, 0
    %1195 = vmatprep.subr.bf16.mxu0 0
    %1196 = vmatpush1.bf16.msra.mxu0 %v528
    %1197 = vmatprep.subr.bf16.mxu0 0
    %1198 = vmatpush1.bf16.msra.mxu0 0
    %1199 = vmatprep.subr.bf16.mxu0 0
    %1200 = vmatpush1.bf16.msra.mxu0 0
    %1201 = vmatprep.subr.bf16.mxu0 0
    %1202 = vmatpush1.bf16.msra.mxu0 0
    %1203 = vmatprep.subr.bf16.mxu0 0
    %1204 = vmatpush1.bf16.msra.mxu0 0
    %1205 = vmatprep.subr.bf16.mxu0 0
    %1206 = vmatpush1.bf16.msra.mxu0 0
    %1207 = vmatprep.subr.bf16.mxu0 0
    %1208 = vmatpush1.bf16.msra.mxu0 0
    %1209 = vmatprep.subr.bf16.mxu0 0
    %1210 = vmatpush1.bf16.msra.mxu0 0
    %1211 = vmatprep.subr.bf16.mxu0 0
    %1212 = vmatpush1.bf16.msra.mxu0 0
    %1213 = vmatprep.subr.bf16.mxu0 0
    %1214 = vmatpush1.bf16.msra.mxu0 0
    %1215 = vmatprep.subr.bf16.mxu0 0
    %1216 = vmatpush1.bf16.msra.mxu0 0
    %1217 = vmatprep.subr.bf16.mxu0 0
    %1218 = vmatpush1.bf16.msra.mxu0 0
    %1219 = vmatprep.subr.bf16.mxu0 0
    %1220 = vmatpush1.bf16.msra.mxu0 0
    %1221 = vmatprep.subr.bf16.mxu0 0
    %1222 = vmatpush1.bf16.msra.mxu0 0
    %1223 = vmatprep.subr.bf16.mxu0 0
    %1224 = vmatpush1.bf16.msra.mxu0 0
    %1225 = vmatprep.subr.bf16.mxu0 0
    %1226 = vmatpush1.bf16.msra.mxu0 0
    %1227 = vmatprep.mubr.bf16.mxu0 0
    %1228 = vmatmul.mubr.bf16.gmra.mrb[0].mxu0 %v1193
    %v1229 = vpop.f32.mrb[0].mxu0
    %v1230 = vadd.f32 0.0, %v1229
    %v1231 = vpop.f32.mrb[0].mxu0
    %v1232 = vpop.f32.mrb[0].mxu0
    %v1233 = vpop.f32.mrb[0].mxu0
    %1234 = vdwg.mxu0
    %v1236 = vsel %vm299, %v1075, 0
    %1238 = vmatprep.subr.bf16.mxu0 0
    %1239 = vmatpush1.bf16.msra.mxu0 %v574
    %1240 = vmatprep.subr.bf16.mxu0 0
    %1241 = vmatpush1.bf16.msra.mxu0 0
    %1242 = vmatprep.subr.bf16.mxu0 0
    %1243 = vmatpush1.bf16.msra.mxu0 0
    %1244 = vmatprep.subr.bf16.mxu0 0
    %1245 = vmatpush1.bf16.msra.mxu0 0
    %1246 = vmatprep.subr.bf16.mxu0 0
    %1247 = vmatpush1.bf16.msra.mxu0 0
    %1248 = vmatprep.subr.bf16.mxu0 0
    %1249 = vmatpush1.bf16.msra.mxu0 0
    %1250 = vmatprep.subr.bf16.mxu0 0
    %1251 = vmatpush1.bf16.msra.mxu0 0
    %1252 = vmatprep.subr.bf16.mxu0 0
    %1253 = vmatpush1.bf16.msra.mxu0 0
    %1254 = vmatprep.subr.bf16.mxu0 0
    %1255 = vmatpush1.bf16.msra.mxu0 0
    %1256 = vmatprep.subr.bf16.mxu0 0
    %1257 = vmatpush1.bf16.msra.mxu0 0
    %1258 = vmatprep.subr.bf16.mxu0 0
    %1259 = vmatpush1.bf16.msra.mxu0 0
    %1260 = vmatprep.subr.bf16.mxu0 0
    %1261 = vmatpush1.bf16.msra.mxu0 0
    %1262 = vmatprep.subr.bf16.mxu0 0
    %1263 = vmatpush1.bf16.msra.mxu0 0
    %1264 = vmatprep.subr.bf16.mxu0 0
    %1265 = vmatpush1.bf16.msra.mxu0 0
    %1266 = vmatprep.subr.bf16.mxu0 0
    %1267 = vmatpush1.bf16.msra.mxu0 0
    %1268 = vmatprep.subr.bf16.mxu0 0
    %1269 = vmatpush1.bf16.msra.mxu0 0
    %1270 = vmatprep.mubr.bf16.mxu0 0
    %1271 = vmatmul.mubr.bf16.gmra.mrb[0].mxu0 %v1236
    %v1272 = vpop.f32.mrb[0].mxu0
    %v1273 = vadd.f32 %v1230, %v1272
    %v1274 = vpop.f32.mrb[0].mxu0
    %v1275 = vpop.f32.mrb[0].mxu0
    %v1276 = vpop.f32.mrb[0].mxu0
    %1277 = vdwg.mxu0
    %1278 = vrot.lane.b32.xlu0 %v966, 112
    %v1279 = vpop.permute.xlu0 %1278
    %1280 = vrot.lane.b32.xlu0 %v967, 112
    %v1281 = vpop.permute.xlu0 %1280
    %v1283 = vsel %vm299, %v1279, 0
    %v1286 = vsel %vm299, %v1281, 0
    %1288 = vmatprep.subr.bf16.mxu0 0
    %1289 = vmatpush1.bf16.xpose.msra.mxu0 %v1286
    %1290 = vmatprep.subr.bf16.mxu0 0
    %1291 = vmatpush1.bf16.xpose.msra.mxu0 0
    %1292 = vmatprep.subr.bf16.mxu0 0
    %1293 = vmatpush1.bf16.xpose.msra.mxu0 0
    %1294 = vmatprep.subr.bf16.mxu0 0
    %1295 = vmatpush1.bf16.xpose.msra.mxu0 0
    %1296 = vmatprep.subr.bf16.mxu0 0
    %1297 = vmatpush1.bf16.xpose.msra.mxu0 0
    %1298 = vmatprep.subr.bf16.mxu0 0
    %1299 = vmatpush1.bf16.xpose.msra.mxu0 0
    %1300 = vmatprep.subr.bf16.mxu0 0
    %1301 = vmatpush1.bf16.xpose.msra.mxu0 0
    %1302 = vmatprep.subr.bf16.mxu0 0
    %1303 = vmatpush1.bf16.xpose.msra.mxu0 0
    %1304 = vmatprep.subr.bf16.mxu0 0
    %1305 = vmatpush1.bf16.xpose.msra.mxu0 0
    %1306 = vmatprep.subr.bf16.mxu0 0
    %1307 = vmatpush1.bf16.xpose.msra.mxu0 0
    %1308 = vmatprep.subr.bf16.mxu0 0
    %1309 = vmatpush1.bf16.xpose.msra.mxu0 0
    %1310 = vmatprep.subr.bf16.mxu0 0
    %1311 = vmatpush1.bf16.xpose.msra.mxu0 0
    %1312 = vmatprep.subr.bf16.mxu0 0
    %1313 = vmatpush1.bf16.xpose.msra.mxu0 0
    %1314 = vmatprep.subr.bf16.mxu0 0
    %1315 = vmatpush1.bf16.xpose.msra.mxu0 0
    %1316 = vmatprep.subr.bf16.mxu0 0
    %1317 = vmatpush1.bf16.xpose.msra.mxu0 0
    %1318 = vmatprep.subr.bf16.mxu0 0
    %1319 = vmatpush1.bf16.xpose.msra.mxu0 0
    %1320 = vmatprep.mubr.bf16.mxu0 0
    %1321 = vmatmul.mubr.bf16.gmra.mrb[0].mxu0 %v1283
    %v1322 = vpop.f32.mrb[0].mxu0
    %v1323 = vadd.f32 0.0, %v1322
    %v1324 = vpop.f32.mrb[0].mxu0
    %v1325 = vpop.f32.mrb[0].mxu0
    %v1326 = vpop.f32.mrb[0].mxu0
    %1327 = vdwg.mxu0
    %v1328 = vsel %vm299, %v1323, -inf
    %1329 = vmax.xlane.f32.xlu0 %v1328
    %v1330 = vpop.xlane.xlu0 %1329
    %v1331 = vsub.f32 %v1323, %v1330
    %v1332 = vmul.f32 %v1331, 1.442695
    %v1333 = vpow.pop %v1332
    %v1334 = vsel %vm299, %v1333, 0.0
    %1335 = vadd.xlane.f32.xlu0 %v1334
    %v1336 = vpop.xlane.xlu0 %1335
    %v1337 = vrcp.pop %v1336
    %v1338 = vmul.f32 %v1333, %v1337
    %v1339 = vpack.c.bf16 %v1338, %v1338
    %s1340 = scalar_lea.vmem [#allocation12], 20
    %1341 = vst.msk [vmem:[%s1340] sm:$0xf] %vm358, %v1339
    %1342 = vrot.lane.b32.xlu0 %v968, 112
    %v1343 = vpop.permute.xlu0 %1342
    %v1345 = vsel %vm299, %v1339, 0
    %v1348 = vsel %vm363, %v1343, 0
    %1350 = vmatprep.subr.bf16.mxu0 0
    %1351 = vmatpush1.bf16.msra.mxu0 %v1348
    %1352 = vmatprep.subr.bf16.mxu0 0
    %1353 = vmatpush1.bf16.msra.mxu0 0
    %1354 = vmatprep.subr.bf16.mxu0 0
    %1355 = vmatpush1.bf16.msra.mxu0 0
    %1356 = vmatprep.subr.bf16.mxu0 0
    %1357 = vmatpush1.bf16.msra.mxu0 0
    %1358 = vmatprep.subr.bf16.mxu0 0
    %1359 = vmatpush1.bf16.msra.mxu0 0
    %1360 = vmatprep.subr.bf16.mxu0 0
    %1361 = vmatpush1.bf16.msra.mxu0 0
    %1362 = vmatprep.subr.bf16.mxu0 0
    %1363 = vmatpush1.bf16.msra.mxu0 0
    %1364 = vmatprep.subr.bf16.mxu0 0
    %1365 = vmatpush1.bf16.msra.mxu0 0
    %1366 = vmatprep.subr.bf16.mxu0 0
    %1367 = vmatpush1.bf16.msra.mxu0 0
    %1368 = vmatprep.subr.bf16.mxu0 0
    %1369 = vmatpush1.bf16.msra.mxu0 0
    %1370 = vmatprep.subr.bf16.mxu0 0
    %1371 = vmatpush1.bf16.msra.mxu0 0
    %1372 = vmatprep.subr.bf16.mxu0 0
    %1373 = vmatpush1.bf16.msra.mxu0 0
    %1374 = vmatprep.subr.bf16.mxu0 0
    %1375 = vmatpush1.bf16.msra.mxu0 0
    %1376 = vmatprep.subr.bf16.mxu0 0
    %1377 = vmatpush1.bf16.msra.mxu0 0
    %1378 = vmatprep.subr.bf16.mxu0 0
    %1379 = vmatpush1.bf16.msra.mxu0 0
    %1380 = vmatprep.subr.bf16.mxu0 0
    %1381 = vmatpush1.bf16.msra.mxu0 0
    %1382 = vmatprep.mubr.bf16.mxu0 0
    %1383 = vmatmul.mubr.bf16.gmra.mrb[0].mxu0 %v1345
    %v1384 = vpop.f32.mrb[0].mxu0
    %v1385 = vadd.f32 0.0, %v1384
    %v1386 = vpop.f32.mrb[0].mxu0
    %v1387 = vpop.f32.mrb[0].mxu0
    %v1388 = vpop.f32.mrb[0].mxu0
    %1389 = vdwg.mxu0
    %v1390 = vpack.c.bf16 %v1385, %v1385
    %v1392 = vsel %vm299, %v1390, 0
    %1394 = vmatprep.subr.bf16.mxu0 0
    %1395 = vmatpush1.bf16.msra.mxu0 %v733
    %1396 = vmatprep.subr.bf16.mxu0 0
    %1397 = vmatpush1.bf16.msra.mxu0 0
    %1398 = vmatprep.subr.bf16.mxu0 0
    %1399 = vmatpush1.bf16.msra.mxu0 0
    %1400 = vmatprep.subr.bf16.mxu0 0
    %1401 = vmatpush1.bf16.msra.mxu0 0
    %1402 = vmatprep.subr.bf16.mxu0 0
    %1403 = vmatpush1.bf16.msra.mxu0 0
    %1404 = vmatprep.subr.bf16.mxu0 0
    %1405 = vmatpush1.bf16.msra.mxu0 0
    %1406 = vmatprep.subr.bf16.mxu0 0
    %1407 = vmatpush1.bf16.msra.mxu0 0
    %1408 = vmatprep.subr.bf16.mxu0 0
    %1409 = vmatpush1.bf16.msra.mxu0 0
    %1410 = vmatprep.subr.bf16.mxu0 0
    %1411 = vmatpush1.bf16.msra.mxu0 0
    %1412 = vmatprep.subr.bf16.mxu0 0
    %1413 = vmatpush1.bf16.msra.mxu0 0
    %1414 = vmatprep.subr.bf16.mxu0 0
    %1415 = vmatpush1.bf16.msra.mxu0 0
    %1416 = vmatprep.subr.bf16.mxu0 0
    %1417 = vmatpush1.bf16.msra.mxu0 0
    %1418 = vmatprep.subr.bf16.mxu0 0
    %1419 = vmatpush1.bf16.msra.mxu0 0
    %1420 = vmatprep.subr.bf16.mxu0 0
    %1421 = vmatpush1.bf16.msra.mxu0 0
    %1422 = vmatprep.subr.bf16.mxu0 0
    %1423 = vmatpush1.bf16.msra.mxu0 0
    %1424 = vmatprep.subr.bf16.mxu0 0
    %1425 = vmatpush1.bf16.msra.mxu0 0
    %1426 = vmatprep.mubr.bf16.mxu0 0
    %1427 = vmatmul.mubr.bf16.gmra.mrb[0].mxu0 %v1392
    %v1428 = vpop.f32.mrb[0].mxu0
    %v1429 = vadd.f32 0.0, %v1428
    %v1430 = vpop.f32.mrb[0].mxu0
    %v1431 = vpop.f32.mrb[0].mxu0
    %v1432 = vpop.f32.mrb[0].mxu0
    %1433 = vdwg.mxu0
    %v1434 = vadd.f32 %v1273, %v1429
    %1435 = vrot.lane.b32.xlu0 %v966, 104
    %v1436 = vpop.permute.xlu0 %1435
    %1437 = vrot.lane.b32.xlu0 %v967, 104
    %v1438 = vpop.permute.xlu0 %1437
    %v1440 = vsel %vm299, %v1436, 0
    %v1443 = vsel %vm299, %v1438, 0
    %1445 = vmatprep.subr.bf16.mxu0 0
    %1446 = vmatpush1.bf16.xpose.msra.mxu0 %v1443
    %1447 = vmatprep.subr.bf16.mxu0 0
    %1448 = vmatpush1.bf16.xpose.msra.mxu0 0
    %1449 = vmatprep.subr.bf16.mxu0 0
    %1450 = vmatpush1.bf16.xpose.msra.mxu0 0
    %1451 = vmatprep.subr.bf16.mxu0 0
    %1452 = vmatpush1.bf16.xpose.msra.mxu0 0
    %1453 = vmatprep.subr.bf16.mxu0 0
    %1454 = vmatpush1.bf16.xpose.msra.mxu0 0
    %1455 = vmatprep.subr.bf16.mxu0 0
    %1456 = vmatpush1.bf16.xpose.msra.mxu0 0
    %1457 = vmatprep.subr.bf16.mxu0 0
    %1458 = vmatpush1.bf16.xpose.msra.mxu0 0
    %1459 = vmatprep.subr.bf16.mxu0 0
    %1460 = vmatpush1.bf16.xpose.msra.mxu0 0
    %1461 = vmatprep.subr.bf16.mxu0 0
    %1462 = vmatpush1.bf16.xpose.msra.mxu0 0
    %1463 = vmatprep.subr.bf16.mxu0 0
    %1464 = vmatpush1.bf16.xpose.msra.mxu0 0
    %1465 = vmatprep.subr.bf16.mxu0 0
    %1466 = vmatpush1.bf16.xpose.msra.mxu0 0
    %1467 = vmatprep.subr.bf16.mxu0 0
    %1468 = vmatpush1.bf16.xpose.msra.mxu0 0
    %1469 = vmatprep.subr.bf16.mxu0 0
    %1470 = vmatpush1.bf16.xpose.msra.mxu0 0
    %1471 = vmatprep.subr.bf16.mxu0 0
    %1472 = vmatpush1.bf16.xpose.msra.mxu0 0
    %1473 = vmatprep.subr.bf16.mxu0 0
    %1474 = vmatpush1.bf16.xpose.msra.mxu0 0
    %1475 = vmatprep.subr.bf16.mxu0 0
    %1476 = vmatpush1.bf16.xpose.msra.mxu0 0
    %1477 = vmatprep.mubr.bf16.mxu0 0
    %1478 = vmatmul.mubr.bf16.gmra.mrb[0].mxu0 %v1440
    %v1479 = vpop.f32.mrb[0].mxu0
    %v1480 = vadd.f32 0.0, %v1479
    %v1481 = vpop.f32.mrb[0].mxu0
    %v1482 = vpop.f32.mrb[0].mxu0
    %v1483 = vpop.f32.mrb[0].mxu0
    %1484 = vdwg.mxu0
    %v1485 = vsel %vm299, %v1480, -inf
    %1486 = vmax.xlane.f32.xlu0 %v1485
    %v1487 = vpop.xlane.xlu0 %1486
    %v1488 = vsub.f32 %v1480, %v1487
    %v1489 = vmul.f32 %v1488, 1.442695
    %v1490 = vpow.pop %v1489
    %v1491 = vsel %vm299, %v1490, 0.0
    %1492 = vadd.xlane.f32.xlu0 %v1491
    %v1493 = vpop.xlane.xlu0 %1492
    %v1494 = vrcp.pop %v1493
    %v1495 = vmul.f32 %v1490, %v1494
    %v1496 = vpack.c.bf16 %v1495, %v1495
    %s1497 = scalar_lea.vmem [#allocation12], 28
    %1498 = vst.msk [vmem:[%s1497] sm:$0xf] %vm358, %v1496
    %1499 = vrot.lane.b32.xlu0 %v968, 104
    %v1500 = vpop.permute.xlu0 %1499
    %v1502 = vsel %vm299, %v1496, 0
    %v1505 = vsel %vm363, %v1500, 0
    %1507 = vmatprep.subr.bf16.mxu0 0
    %1508 = vmatpush1.bf16.msra.mxu0 %v1505
    %1509 = vmatprep.subr.bf16.mxu0 0
    %1510 = vmatpush1.bf16.msra.mxu0 0
    %1511 = vmatprep.subr.bf16.mxu0 0
    %1512 = vmatpush1.bf16.msra.mxu0 0
    %1513 = vmatprep.subr.bf16.mxu0 0
    %1514 = vmatpush1.bf16.msra.mxu0 0
    %1515 = vmatprep.subr.bf16.mxu0 0
    %1516 = vmatpush1.bf16.msra.mxu0 0
    %1517 = vmatprep.subr.bf16.mxu0 0
    %1518 = vmatpush1.bf16.msra.mxu0 0
    %1519 = vmatprep.subr.bf16.mxu0 0
    %1520 = vmatpush1.bf16.msra.mxu0 0
    %1521 = vmatprep.subr.bf16.mxu0 0
    %1522 = vmatpush1.bf16.msra.mxu0 0
    %1523 = vmatprep.subr.bf16.mxu0 0
    %1524 = vmatpush1.bf16.msra.mxu0 0
    %1525 = vmatprep.subr.bf16.mxu0 0
    %1526 = vmatpush1.bf16.msra.mxu0 0
    %1527 = vmatprep.subr.bf16.mxu0 0
    %1528 = vmatpush1.bf16.msra.mxu0 0
    %1529 = vmatprep.subr.bf16.mxu0 0
    %1530 = vmatpush1.bf16.msra.mxu0 0
    %1531 = vmatprep.subr.bf16.mxu0 0
    %1532 = vmatpush1.bf16.msra.mxu0 0
    %1533 = vmatprep.subr.bf16.mxu0 0
    %1534 = vmatpush1.bf16.msra.mxu0 0
    %1535 = vmatprep.subr.bf16.mxu0 0
    %1536 = vmatpush1.bf16.msra.mxu0 0
    %1537 = vmatprep.subr.bf16.mxu0 0
    %1538 = vmatpush1.bf16.msra.mxu0 0
    %1539 = vmatprep.mubr.bf16.mxu0 0
    %1540 = vmatmul.mubr.bf16.gmra.mrb[0].mxu0 %v1502
    %v1541 = vpop.f32.mrb[0].mxu0
    %v1542 = vadd.f32 0.0, %v1541
    %v1543 = vpop.f32.mrb[0].mxu0
    %v1544 = vpop.f32.mrb[0].mxu0
    %v1545 = vpop.f32.mrb[0].mxu0
    %1546 = vdwg.mxu0
    %v1547 = vpack.c.bf16 %v1542, %v1542
    %v1549 = vsel %vm299, %v1547, 0
    %1551 = vmatprep.subr.bf16.mxu0 0
    %1552 = vmatpush1.bf16.msra.mxu0 %v893
    %1553 = vmatprep.subr.bf16.mxu0 0
    %1554 = vmatpush1.bf16.msra.mxu0 0
    %1555 = vmatprep.subr.bf16.mxu0 0
    %1556 = vmatpush1.bf16.msra.mxu0 0
    %1557 = vmatprep.subr.bf16.mxu0 0
    %1558 = vmatpush1.bf16.msra.mxu0 0
    %1559 = vmatprep.subr.bf16.mxu0 0
    %1560 = vmatpush1.bf16.msra.mxu0 0
    %1561 = vmatprep.subr.bf16.mxu0 0
    %1562 = vmatpush1.bf16.msra.mxu0 0
    %1563 = vmatprep.subr.bf16.mxu0 0
    %1564 = vmatpush1.bf16.msra.mxu0 0
    %1565 = vmatprep.subr.bf16.mxu0 0
    %1566 = vmatpush1.bf16.msra.mxu0 0
    %1567 = vmatprep.subr.bf16.mxu0 0
    %1568 = vmatpush1.bf16.msra.mxu0 0
    %1569 = vmatprep.subr.bf16.mxu0 0
    %1570 = vmatpush1.bf16.msra.mxu0 0
    %1571 = vmatprep.subr.bf16.mxu0 0
    %1572 = vmatpush1.bf16.msra.mxu0 0
    %1573 = vmatprep.subr.bf16.mxu0 0
    %1574 = vmatpush1.bf16.msra.mxu0 0
    %1575 = vmatprep.subr.bf16.mxu0 0
    %1576 = vmatpush1.bf16.msra.mxu0 0
    %1577 = vmatprep.subr.bf16.mxu0 0
    %1578 = vmatpush1.bf16.msra.mxu0 0
    %1579 = vmatprep.subr.bf16.mxu0 0
    %1580 = vmatpush1.bf16.msra.mxu0 0
    %1581 = vmatprep.subr.bf16.mxu0 0
    %1582 = vmatpush1.bf16.msra.mxu0 0
    %1583 = vmatprep.mubr.bf16.mxu0 0
    %1584 = vmatmul.mubr.bf16.gmra.mrb[0].mxu0 %v1549
    %v1585 = vpop.f32.mrb[0].mxu0
    %v1586 = vadd.f32 0.0, %v1585
    %v1587 = vpop.f32.mrb[0].mxu0
    %v1588 = vpop.f32.mrb[0].mxu0
    %v1589 = vpop.f32.mrb[0].mxu0
    %1590 = vdwg.mxu0
    %v1591 = vadd.f32 %v1434, %v1586
    %v1592 = vadd.f32 %v1591, %v105
    %v1593 = vsel %vm123, %v1592, 0.0
    %1594 = vadd.xlane.f32.xlu0 %v1593
    %v1595 = vpop.xlane.xlu0 %1594
    %v1596 = vmul.f32 %v1595, %v940
    %v1597 = vsub.f32 %v1592, %v1596
    %v1598 = vmul.f32 %v1597, %v1597
    %v1599 = vsel %vm123, %v1598, 0.0
    %1600 = vadd.xlane.f32.xlu0 %v1599
    %v1601 = vpop.xlane.xlu0 %1600
    %v1602 = vmul.f32 %v1601, %v940
    %v1603 = vadd.f32 %v1602, 1e-05
    %v1604 = vrsqrt.pop %v1603
    %v1605 = vmul.f32 %v1597, %v1604
    %v1606 = vmul.f32 %v1605, %v955
    %v1607 = vadd.f32 %v1606, %v962
    %s1608 = scalar_lea.vmem [#allocation11], 8
    %1609 = vst.msk [vmem:[%s1608] sm:$0xff] %vm123, %v1607
    // Predicated region
    $region54: #{tpu_custom_call.1} parent=1 // pred_check
      _
    $region55: #{tpu_custom_call.1} parent=1 // pred_check_branch
      %1611 = sbr.rel (0) target = $region57
    $region56: #{tpu_custom_call.1} parent=1 // pred_region
      %s1613 = ssub.s32 256, 256
      %1614 = vsyncadd [#allocation4], %s1613
      %s1615 = sshll.u32 [#allocation11], 4
      %s1616 = int_to_ptr.vmem [resolvable:$true] %s1615
      %1621 = dma.vmem_to_hbm [thread:$0]  %s1616, 256, %s8, [#allocation4], 128, 128, 8
    $region57: #{tpu_custom_call.1} parent=1 // pred_fallthru
      _
    // Predicated region
    $region58: #{tpu_custom_call.1} parent=1 // pred_check
      _
    $region59: #{tpu_custom_call.1} parent=1 // pred_check_branch
      %1623 = sbr.rel (0) target = $region61
    $region60: #{tpu_custom_call.1} parent=1 // pred_region
      %s1625 = ssub.s32 512, 512
      %1626 = vsyncadd [#allocation13], %s1625
      %s1627 = sshll.u32 [#allocation12], 4
      %s1628 = int_to_ptr.vmem [resolvable:$true] %s1627
      %1633 = dma.vmem_to_hbm [thread:$0]  %s1628, 512, %s9, [#allocation13], 64, 64, 4
    $region61: #{tpu_custom_call.1} parent=1 // pred_fallthru
      _
    // Predicated region
    $region62: #{tpu_custom_call.1} parent=1 // pred_check
      _
    $region63: #{tpu_custom_call.1} parent=1 // pred_check_branch
      %1635 = sbr.rel (0) target = $region65
    $region64: #{tpu_custom_call.1} parent=1 // pred_region
      %1636 = dma.done [#allocation4], 256
    $region65: #{tpu_custom_call.1} parent=1 // pred_fallthru
      _
    // Predicated region
    $region66: #{tpu_custom_call.1} parent=1 // pred_check
      _
    $region67: #{tpu_custom_call.1} parent=1 // pred_check_branch
      %1638 = sbr.rel (0) target = $region69
    $region68: #{tpu_custom_call.1} parent=1 // pred_region
      %1639 = dma.done [#allocation13], 512
    $region69: #{tpu_custom_call.1} parent=1 // pred_fallthru
      _
    %1640 = vsyncpa [#allocation3], 1
    %1641 = vsyncpa [#allocation6], 1
    %1642 = vsyncpa [#allocation9], 1
    %1643 = vsyncpa [#allocation4], 1
    %1644 = vsyncpa [#allocation13], 1

</llo_original>
